<compile_context>
chip_gen: v6e
topology: v6e:2x2x1
jax: 0.10.0
libtpu: 0.0.40
codegen_flags: <defaults>
</compile_context>

<pallas_src>
import functools

import jax
import jax.numpy as jnp
from jax.experimental import pallas as pl
from jax.experimental.pallas import tpu as pltpu


_LPAD = 8   # left halo width in the stride-1 scratch; multiple of 8 so the big
            # interior store is sublane-aligned (only column _LPAD-1 is read).


def _round_up(v, m):
    return ((v + m - 1) // m) * m


# -----------------------------------------------------------------------------
# stride == 1 kernel: one (batch_tile x row-strip) block per grid step.
# Grid = (N // batch_tile, H // row_tile), both axes "parallel".
# -----------------------------------------------------------------------------
def _ir_kernel_s1(xs_ref, xt_ref, xb_ref, *refs, has_expand, use_res):
    if has_expand:
        (w1_ref, b1_ref, wdw_ref, b2_ref, w3_ref, b3_ref, o_ref, h_scr) = refs
    else:
        (wdw_ref, b2_ref, w3_ref, b3_ref, o_ref, h_scr) = refs
        w1_ref = b1_ref = None

    bt, So, W, Cin = xs_ref.shape
    hidden = h_scr.shape[-1]
    Cout = w3_ref.shape[-1]
    sdt = h_scr.dtype
    L = _LPAD
    r = pl.program_id(1)
    R = pl.num_programs(1)

    def expand(xv):
        rows = xv.shape[1]
        if has_expand:
            h = jnp.dot(xv.reshape(bt * rows * W, Cin), w1_ref[...],
                        preferred_element_type=jnp.float32)
            h = jnp.clip(h + b1_ref[...], 0.0, 6.0)      # BN scale pre-folded
            return h.reshape(bt, rows, W, hidden)
        return xv.astype(jnp.float32)                    # hidden == Cin

    x = xs_ref[...]                                      # (bt, So, W, Cin) bf16

    # Interior rows: sublane-aligned store at column offset L (multiple of 8).
    h_scr[:, 1:So + 1, L:L + W, :] = expand(x).astype(sdt)

    # Top / bottom halo rows: expand of the neighbouring input row, or zeros
    # at the image border (conv padding).
    @pl.when(r > 0)
    def _():
        h_scr[:, 0:1, L:L + W, :] = expand(xt_ref[...]).astype(sdt)

    @pl.when(r == 0)
    def _():
        h_scr[:, 0:1, L:L + W, :] = jnp.zeros((bt, 1, W, hidden), sdt)

    @pl.when(r < R - 1)
    def _():
        h_scr[:, So + 1:So + 2, L:L + W, :] = expand(xb_ref[...]).astype(sdt)

    @pl.when(r == R - 1)
    def _():
        h_scr[:, So + 1:So + 2, L:L + W, :] = jnp.zeros((bt, 1, W, hidden), sdt)

    # Zero exactly the two halo columns the 3x3 taps read (L-1 and L+W).
    # NOTE: columns [0, L-1) and (L+W, Wsc) are never read by any tap (pad=1,
    # kernel=3) and are intentionally left uninitialised.
    zc = jnp.zeros((bt, So + 2, 1, hidden), sdt)
    h_scr[:, :, L - 1:L, :] = zc
    h_scr[:, :, L + W:L + W + 1, :] = zc

    # ---- depthwise 3x3, stride 1, pad 1 + bias + ReLU6 (f32 accumulation) ----
    wdw = wdw_ref[...]                                   # (3, 3, hidden) f32
    acc = None
    for dy in range(3):
        for dx in range(3):
            tap = h_scr[:, dy:dy + So, L - 1 + dx:L - 1 + dx + W, :]
            term = tap.astype(jnp.float32) * wdw[dy, dx, :]
            acc = term if acc is None else acc + term
    acc = jnp.clip(acc + b2_ref[...], 0.0, 6.0)

    # ---- project 1x1 (MXU, bf16 x bf16 -> f32) + bias + ReLU6 ----
    y = jnp.dot(acc.reshape(bt * So * W, hidden).astype(jnp.bfloat16),
                w3_ref[...], preferred_element_type=jnp.float32)
    y = jnp.clip(y + b3_ref[...], 0.0, 6.0).reshape(bt, So, W, Cout)

    if use_res:                                          # stride==1, Cin==Cout
        y = y + x.astype(jnp.float32)
    o_ref[...] = y.astype(o_ref.dtype)


# -----------------------------------------------------------------------------
# stride == 2 kernel: whole feature map per batch element; the wrapper already
# deinterleaved the input columns into [even | gap | zero | odd (| zero)]
# regions so every depthwise tap is a contiguous column slice.
# -----------------------------------------------------------------------------
def _ir_kernel_s2(x_ref, *refs, has_expand, Wo, Woo, P, w_odd):
    if has_expand:
        (w1_ref, b1_ref, wdw_ref, b2_ref, w3_ref, b3_ref, o_ref, h_scr) = refs
    else:
        (wdw_ref, b2_ref, w3_ref, b3_ref, o_ref, h_scr) = refs
        w1_ref = b1_ref = None

    bt, H, Wsc, Cin = x_ref.shape
    hidden = h_scr.shape[-1]
    Cout = w3_ref.shape[-1]
    Ho = o_ref.shape[1]
    sdt = h_scr.dtype

    x = x_ref[...]                                       # (bt, H, Wsc, Cin) bf16
    if has_expand:
        h = jnp.dot(x.reshape(bt * H * Wsc, Cin), w1_ref[...],
                    preferred_element_type=jnp.float32)
        h = jnp.clip(h + b1_ref[...], 0.0, 6.0).reshape(bt, H, Wsc, hidden)
    else:
        h = x.astype(jnp.float32)

    # Whole map, sublane-aligned store at column offset 0.
    h_scr[:, 1:H + 1, :, :] = h.astype(sdt)
    # Zero halo rows (input rows -1 and H).
    zr = jnp.zeros((bt, 1, Wsc, hidden), sdt)
    h_scr[:, 0:1, :, :] = zr
    h_scr[:, H + 1:H + 2, :, :] = zr
    # Zero halo columns: P-1 (input col -1) and, for odd W, P+Woo (input col W).
    # Columns between the even/odd regions hold clip(bias) junk but are never
    # read by any tap.
    zc = jnp.zeros((bt, H + 2, 1, hidden), sdt)
    h_scr[:, :, P - 1:P, :] = zc
    if w_odd:
        h_scr[:, :, P + Woo:P + Woo + 1, :] = zc

    # ---- depthwise 3x3, stride 2: contiguous column slices per dx; rows use a
    # cheap stride-2 slice along the non-tiled H axis. ----
    col0 = (P - 1, 0, P)                                 # dx = 0, 1, 2
    wdw = wdw_ref[...]
    acc = None
    for dy in range(3):
        for dx in range(3):
            c = col0[dx]
            tap = h_scr[:, pl.ds(dy, Ho, 2), c:c + Wo, :]
            term = tap.astype(jnp.float32) * wdw[dy, dx, :]
            acc = term if acc is None else acc + term
    acc = jnp.clip(acc + b2_ref[...], 0.0, 6.0)

    y = jnp.dot(acc.reshape(bt * Ho * Wo, hidden).astype(jnp.bfloat16),
                w3_ref[...], preferred_element_type=jnp.float32)
    y = jnp.clip(y + b3_ref[...], 0.0, 6.0).reshape(bt, Ho, Wo, Cout)
    o_ref[...] = y.astype(o_ref.dtype)                   # no residual at stride 2


# -----------------------------------------------------------------------------
# NHWC wrapper (preferred entry point when stacking blocks).
# -----------------------------------------------------------------------------
def inverted_residual_nhwc(x_nhwc, params, *, stride=1, expand_ratio=6,
                           batch_tile=1, row_tile=None,
                           dw_scratch_dtype=jnp.bfloat16):
    assert stride in (1, 2)
    N, H, W, Cin = x_nhwc.shape
    assert N % batch_tile == 0
    bt = batch_tile
    hidden = params["wdw"].shape[-1]
    Cout = params["w3"].shape[-1]
    has_expand = expand_ratio != 1
    use_res = (stride == 1) and (Cin == Cout)
    Ho = (H - 1) // stride + 1
    Wo = (W - 1) // stride + 1

    # Fold BN scales into the conv weights; only a bias-add + clip remains.
    wdw_f = (params["wdw"] * params["s2"].reshape(1, 1, hidden)).astype(jnp.float32)
    w3_f = (params["w3"] * params["s3"]).astype(jnp.bfloat16)
    b2 = params["b2"].astype(jnp.float32)
    b3 = params["b3"].astype(jnp.float32)
    if has_expand:
        w1_f = (params["w1"] * params["s1"]).astype(jnp.bfloat16)
        b1 = params["b1"].astype(jnp.float32)

    x = x_nhwc.astype(jnp.bfloat16)   # bf16 activation: half the DMA, feeds MXU

    def weight_inputs_and_specs():
        ins, specs = [], []
        if has_expand:
            ins += [w1_f, b1]
            specs += [pl.BlockSpec(w1_f.shape, lambda *_: (0, 0)),
                      pl.BlockSpec(b1.shape, lambda *_: (0, 0))]
        ins += [wdw_f, b2, w3_f, b3]
        specs += [pl.BlockSpec(wdw_f.shape, lambda *_: (0, 0, 0)),
                  pl.BlockSpec(b2.shape, lambda *_: (0, 0)),
                  pl.BlockSpec(w3_f.shape, lambda *_: (0, 0)),
                  pl.BlockSpec(b3.shape, lambda *_: (0, 0))]
        return ins, specs

    if stride == 1:
        if row_tile is None:
            # ~8 output rows per strip; keep bt*row_tile*W >= ~512 at real sizes.
            divs = [d for d in range(1, Ho + 1) if Ho % d == 0]
            row_tile = min(divs, key=lambda d: (abs(d - 8), -d))
        assert Ho % row_tile == 0
        R = Ho // row_tile
        Wsc = _round_up(_LPAD + W + 1, 8)
        assert _LPAD + W + 1 <= Wsc

        in_specs = [
            pl.BlockSpec((bt, row_tile, W, Cin), lambda n, r: (n, r, 0, 0)),
            pl.BlockSpec((bt, 1, W, Cin),
                         lambda n, r: (n, jnp.maximum(r * row_tile - 1, 0), 0, 0)),
            pl.BlockSpec((bt, 1, W, Cin),
                         lambda n, r: (n, jnp.minimum((r + 1) * row_tile, H - 1), 0, 0)),
        ]
        inputs = [x, x, x]
        w_ins, w_specs = weight_inputs_and_specs()
        inputs += w_ins
        in_specs += w_specs

        kernel = functools.partial(_ir_kernel_s1, has_expand=has_expand,
                                   use_res=use_res)
        return pl.pallas_call(
            kernel,
            out_shape=jax.ShapeDtypeStruct((N, Ho, Wo, Cout), jnp.bfloat16),
            grid_spec=pltpu.PrefetchScalarGridSpec(
                num_scalar_prefetch=0,
                grid=(N // bt, R),
                in_specs=in_specs,
                out_specs=pl.BlockSpec((bt, row_tile, Wo, Cout),
                                       lambda n, r: (n, r, 0, 0)),
                scratch_shapes=[pltpu.VMEM((bt, row_tile + 2, Wsc, hidden),
                                           dw_scratch_dtype)]),
            compiler_params=pltpu.CompilerParams(
                dimension_semantics=("parallel", "parallel"),
                vmem_limit_bytes=48 * 1024 * 1024),
        )(*inputs)

    # ---- stride == 2 ----
    Woo = W // 2
    w_odd = (W % 2 == 1)
    P = _round_up(Wo + 1, 8)                 # odd-region start (col P-1 = zero halo)
    Wsc = _round_up(P + Woo + (1 if w_odd else 0), 8)
    x_dw = jnp.zeros((N, H, Wsc, Cin), jnp.bfloat16)
    x_dw = x_dw.at[:, :, 0:Wo, :].set(x[:, :, 0::2, :])          # even input cols
    x_dw = x_dw.at[:, :, P:P + Woo, :].set(x[:, :, 1::2, :])     # odd input cols

    in_specs = [pl.BlockSpec((bt, H, Wsc, Cin), lambda n: (n, 0, 0, 0))]
    inputs = [x_dw]
    w_ins, w_specs = weight_inputs_and_specs()
    inputs += w_ins
    in_specs += w_specs

    kernel = functools.partial(_ir_kernel_s2, has_expand=has_expand,
                               Wo=Wo, Woo=Woo, P=P, w_odd=w_odd)
    return pl.pallas_call(
        kernel,
        out_shape=jax.ShapeDtypeStruct((N, Ho, Wo, Cout), jnp.bfloat16),
        grid_spec=pltpu.PrefetchScalarGridSpec(
            num_scalar_prefetch=0,
            grid=(N // bt,),
            in_specs=in_specs,
            out_specs=pl.BlockSpec((bt, Ho, Wo, Cout), lambda n: (n, 0, 0, 0)),
            scratch_shapes=[pltpu.VMEM((bt, H + 2, Wsc, hidden),
                                       dw_scratch_dtype)]),
        compiler_params=pltpu.CompilerParams(
            dimension_semantics=("parallel",),
            vmem_limit_bytes=48 * 1024 * 1024),
    )(*inputs)


# -----------------------------------------------------------------------------
# NCHW wrapper (module-boundary interface). When chaining blocks, call
# inverted_residual_nhwc directly to avoid per-block transpose HBM round trips.
# -----------------------------------------------------------------------------
def inverted_residual(x_nchw, params, **kw):
    x = jnp.transpose(x_nchw, (0, 2, 3, 1))
    y = inverted_residual_nhwc(x, params, **kw)
    return jnp.transpose(y, (0, 3, 1, 2))


# -----------------------------------------------------------------------------
# Deterministic parameter init (BN as separate scale/bias; wrapper folds them,
# the reference applies them explicitly).
# -----------------------------------------------------------------------------
def init_params(key, in_channels, out_channels, expand_ratio, eps=1e-5):
    hidden = int(round(in_channels * expand_ratio))
    ks = jax.random.split(key, 15)

    def bn_fold(kg, kb, km, kv, c):
        gamma = 1.0 + 0.1 * jax.random.normal(kg, (c,), jnp.float32)
        beta = 0.1 * jax.random.normal(kb, (c,), jnp.float32)
        mean = 0.1 * jax.random.normal(km, (c,), jnp.float32)
        var = jax.random.uniform(kv, (c,), jnp.float32, minval=0.5, maxval=1.5)
        scale = gamma / jnp.sqrt(var + eps)
        bias = beta - mean * scale
        return scale.reshape(1, c), bias.reshape(1, c)

    w1 = 0.2 * jax.random.normal(ks[0], (in_channels, hidden), jnp.float32)
    s1, b1 = bn_fold(ks[1], ks[2], ks[3], ks[4], hidden)
    wdw = 0.2 * jax.random.normal(ks[5], (3, 3, hidden), jnp.float32)
    s2, b2 = bn_fold(ks[6], ks[7], ks[8], ks[9], hidden)
    w3 = 0.2 * jax.random.normal(ks[10], (hidden, out_channels), jnp.float32)
    s3, b3 = bn_fold(ks[11], ks[12], ks[13], ks[14], out_channels)
    return dict(w1=w1, s1=s1, b1=b1, wdw=wdw, s2=s2, b2=b2, w3=w3, s3=s3, b3=b3)


# -----------------------------------------------------------------------------
# Plain-JAX f32 reference (un-folded BN, HIGHEST precision) for validation.
# -----------------------------------------------------------------------------
def reference_nchw(x_nchw, params, *, stride, expand_ratio):
    hi = jax.lax.Precision.HIGHEST
    x = jnp.transpose(x_nchw, (0, 2, 3, 1)).astype(jnp.float32)  # NHWC
    Cin = x.shape[-1]
    Cout = params["w3"].shape[-1]
    h = x
    if expand_ratio != 1:
        h = jnp.einsum("nhwc,cd->nhwd", h, params["w1"], precision=hi)
        h = jnp.clip(h * params["s1"] + params["b1"], 0.0, 6.0)
    hidden = h.shape[-1]
    dw = params["wdw"].reshape(3, 3, 1, hidden)
    h = jax.lax.conv_general_dilated(
        h, dw, window_strides=(stride, stride), padding=((1, 1), (1, 1)),
        dimension_numbers=("NHWC", "HWIO", "NHWC"),
        feature_group_count=hidden, precision=hi)
    h = jnp.clip(h * params["s2"] + params["b2"], 0.0, 6.0)
    y = jnp.einsum("nhwc,cd->nhwd", h, params["w3"], precision=hi)
    y = jnp.clip(y * params["s3"] + params["b3"], 0.0, 6.0)
    if stride == 1 and Cin == Cout:
        y = y + x
    return jnp.transpose(y, (0, 3, 1, 2))


def _check(out, ref, tag):
    assert out.shape == ref.shape, (tag, out.shape, ref.shape)
    err = jnp.abs(out.astype(jnp.float32) - ref)
    max_err, mean_err = float(err.max()), float(err.mean())
    # bf16 activations / scratch / output vs f32 HIGHEST reference.
    assert max_err < 2.5e-1, f"{tag}: max abs error too large: {max_err}"
    assert mean_err < 4e-2, f"{tag}: mean abs error too large: {mean_err}"


if __name__ == "__main__":
    key = jax.random.PRNGKey(0)
    k1, k2, k3, k4, k5, k6 = jax.random.split(key, 6)

    # Test A: expand_ratio=6, stride=1, Cin==Cout -> residual; grid (2, 4) = 8
    # pipelined steps (batch x row-strips), exercises the halo specs.
    N, Cin, H, W = 2, 8, 16, 16
    xA = jax.random.normal(k1, (N, Cin, H, W), jnp.float32)
    pA = init_params(k2, Cin, 8, 6)
    outA = jax.block_until_ready(
        inverted_residual(xA, pA, stride=1, expand_ratio=6, row_tile=4))
    _check(outA, reference_nchw(xA, pA, stride=1, expand_ratio=6), "A")

    # Test B: expand_ratio=1 (no expand conv), stride=1, residual; default
    # row_tile (-> 8 rows per strip, grid (2, 2)).
    xB = jax.random.normal(k3, (N, 16, 16, 16), jnp.float32)
    pB = init_params(k4, 16, 16, 1)
    outB = jax.block_until_ready(
        inverted_residual(xB, pB, stride=1, expand_ratio=1))
    _check(outB, reference_nchw(xB, pB, stride=1, expand_ratio=1), "B")

    # Test C: expand_ratio=6, stride=2 (downsampling, no residual), Cout != Cin;
    # exercises the wrapper column-deinterleave path.
    xC = jax.random.normal(k5, (N, 8, 16, 16), jnp.float32)
    pC = init_params(k6, 8, 16, 6)
    outC = jax.block_until_ready(
        inverted_residual(xC, pC, stride=2, expand_ratio=6))
    _check(outC, reference_nchw(xC, pC, stride=2, expand_ratio=6), "C")

    print("KERNEL_OK")
</pallas_src>

<mosaic_0001>
module attributes {stable_mosaic.version = 11 : i64} {
  func.func @_ir_kernel_s1(%arg0: i32, %arg1: i32, %arg2: memref<1x4x16x8xbf16, #tpu.memory_space<vmem>>, %arg3: memref<1x1x16x8xbf16, #tpu.memory_space<vmem>>, %arg4: memref<1x1x16x8xbf16, #tpu.memory_space<vmem>>, %arg5: memref<8x48xbf16, #tpu.memory_space<vmem>>, %arg6: memref<1x48xf32, #tpu.memory_space<vmem>>, %arg7: memref<3x3x48xf32, #tpu.memory_space<vmem>>, %arg8: memref<1x48xf32, #tpu.memory_space<vmem>>, %arg9: memref<48x8xbf16, #tpu.memory_space<vmem>>, %arg10: memref<1x8xf32, #tpu.memory_space<vmem>>, %arg11: memref<1x4x16x8xbf16, #tpu.memory_space<vmem>>, %arg12: memref<1x6x32x48xbf16, #tpu.memory_space<vmem>>) attributes {dimension_semantics = [#tpu.dimension_semantics<parallel>, #tpu.dimension_semantics<parallel>], iteration_bounds = array<i64: 2, 4>, scalar_prefetch = 0 : i64, scratch_operands = 1 : i64, tpu.core_type = #tpu.core_type<tc>, window_params = [{transform_indices = @transform_0, window_bounds = array<i64: 1, 4, 16, 8>}, {transform_indices = @transform_1, window_bounds = array<i64: 1, 1, 16, 8>}, {transform_indices = @transform_2, window_bounds = array<i64: 1, 1, 16, 8>}, {pipeline_mode = #tpu.pipeline_mode<synchronous>, transform_indices = @transform_3, window_bounds = array<i64: 8, 48>}, {pipeline_mode = #tpu.pipeline_mode<synchronous>, transform_indices = @transform_4, window_bounds = array<i64: 1, 48>}, {pipeline_mode = #tpu.pipeline_mode<synchronous>, transform_indices = @transform_5, window_bounds = array<i64: 3, 3, 48>}, {pipeline_mode = #tpu.pipeline_mode<synchronous>, transform_indices = @transform_6, window_bounds = array<i64: 1, 48>}, {pipeline_mode = #tpu.pipeline_mode<synchronous>, transform_indices = @transform_7, window_bounds = array<i64: 48, 8>}, {pipeline_mode = #tpu.pipeline_mode<synchronous>, transform_indices = @transform_8, window_bounds = array<i64: 1, 8>}, {transform_indices = @transform_9, window_bounds = array<i64: 1, 4, 16, 8>}]} {
    %c0 = arith.constant 0 : index
    %c0_0 = arith.constant 0 : index
    %c0_1 = arith.constant 0 : index
    %c0_2 = arith.constant 0 : index
    %0 = vector.load %arg2[%c0, %c0_0, %c0_1, %c0_2] : memref<1x4x16x8xbf16, #tpu.memory_space<vmem>>, vector<1x4x16x8xbf16>
    %1 = vector.shape_cast %0 : vector<1x4x16x8xbf16> to vector<64x8xbf16>
    %c0_3 = arith.constant 0 : index
    %c0_4 = arith.constant 0 : index
    %2 = vector.load %arg5[%c0_3, %c0_4] : memref<8x48xbf16, #tpu.memory_space<vmem>>, vector<8x48xbf16>
    %cst = arith.constant dense<0.000000e+00> : vector<64x48xf32>
    %3 = tpu.matmul %1, %2, %cst {dimension_numbers = #tpu.dot_dimension_numbers<[1], [0], [0], [1], [0, 0, 1, 1], [], []>} : vector<64x8xbf16>, vector<8x48xbf16>, vector<64x48xf32> -> vector<64x48xf32>
    %c0_5 = arith.constant 0 : index
    %c0_6 = arith.constant 0 : index
    %4 = vector.load %arg6[%c0_5, %c0_6] : memref<1x48xf32, #tpu.memory_space<vmem>>, vector<1x48xf32>
    %5 = vector.broadcast %4 : vector<1x48xf32> to vector<64x48xf32>
    %6 = arith.addf %3, %5 : vector<64x48xf32>
    %cst_7 = arith.constant 0.000000e+00 : f32
    %cst_8 = arith.constant 6.000000e+00 : f32
    %7 = vector.broadcast %cst_7 : f32 to vector<64x48xf32>
    %8 = arith.maximumf %7, %6 : vector<64x48xf32>
    %9 = vector.broadcast %cst_8 : f32 to vector<64x48xf32>
    %10 = arith.minimumf %9, %8 : vector<64x48xf32>
    %11 = vector.shape_cast %10 : vector<64x48xf32> to vector<1x4x16x48xf32>
    %12 = arith.truncf %11 : vector<1x4x16x48xf32> to vector<1x4x16x48xbf16>
    %c0_9 = arith.constant 0 : index
    %c1 = arith.constant 1 : index
    %c8 = arith.constant 8 : index
    %c0_10 = arith.constant 0 : index
    %13 = vector.load %arg12[%c0_9, %c1, %c8, %c0_10] : memref<1x6x32x48xbf16, #tpu.memory_space<vmem>>, vector<1x4x16x48xbf16>
    tpu.vector_store %arg12[%c0_9, %c1, %c8, %c0_10], %12 {strides = array<i32>} : memref<1x6x32x48xbf16, #tpu.memory_space<vmem>>, vector<1x4x16x48xbf16>,
    %c0_i32 = arith.constant 0 : i32
    %14 = arith.cmpi sgt, %arg1, %c0_i32 : i32
    %15 = arith.extui %14 : i1 to i32
    %c0_i32_11 = arith.constant 0 : i32
    %16 = arith.cmpi ne, %15, %c0_i32_11 : i32
    scf.if %16 {
      %c0_76 = arith.constant 0 : index
      %c0_77 = arith.constant 0 : index
      %c0_78 = arith.constant 0 : index
      %c0_79 = arith.constant 0 : index
      %125 = vector.load %arg3[%c0_76, %c0_77, %c0_78, %c0_79] : memref<1x1x16x8xbf16, #tpu.memory_space<vmem>>, vector<1x1x16x8xbf16>
      %126 = vector.shape_cast %125 : vector<1x1x16x8xbf16> to vector<16x8xbf16>
      %c0_80 = arith.constant 0 : index
      %c0_81 = arith.constant 0 : index
      %127 = vector.load %arg5[%c0_80, %c0_81] : memref<8x48xbf16, #tpu.memory_space<vmem>>, vector<8x48xbf16>
      %cst_82 = arith.constant dense<0.000000e+00> : vector<16x48xf32>
      %128 = tpu.matmul %126, %127, %cst_82 {dimension_numbers = #tpu.dot_dimension_numbers<[1], [0], [0], [1], [0, 0, 1, 1], [], []>} : vector<16x8xbf16>, vector<8x48xbf16>, vector<16x48xf32> -> vector<16x48xf32>
      %c0_83 = arith.constant 0 : index
      %c0_84 = arith.constant 0 : index
      %129 = vector.load %arg6[%c0_83, %c0_84] : memref<1x48xf32, #tpu.memory_space<vmem>>, vector<1x48xf32>
      %130 = vector.broadcast %129 : vector<1x48xf32> to vector<16x48xf32>
      %131 = arith.addf %128, %130 : vector<16x48xf32>
      %cst_85 = arith.constant 0.000000e+00 : f32
      %cst_86 = arith.constant 6.000000e+00 : f32
      %132 = vector.broadcast %cst_85 : f32 to vector<16x48xf32>
      %133 = arith.maximumf %132, %131 : vector<16x48xf32>
      %134 = vector.broadcast %cst_86 : f32 to vector<16x48xf32>
      %135 = arith.minimumf %134, %133 : vector<16x48xf32>
      %136 = vector.shape_cast %135 : vector<16x48xf32> to vector<1x1x16x48xf32>
      %137 = arith.truncf %136 : vector<1x1x16x48xf32> to vector<1x1x16x48xbf16>
      %c0_87 = arith.constant 0 : index
      %c0_88 = arith.constant 0 : index
      %c8_89 = arith.constant 8 : index
      %c0_90 = arith.constant 0 : index
      %138 = vector.load %arg12[%c0_87, %c0_88, %c8_89, %c0_90] : memref<1x6x32x48xbf16, #tpu.memory_space<vmem>>, vector<1x1x16x48xbf16>
      tpu.vector_store %arg12[%c0_87, %c0_88, %c8_89, %c0_90], %137 {strides = array<i32>} : memref<1x6x32x48xbf16, #tpu.memory_space<vmem>>, vector<1x1x16x48xbf16>,
    } else {
    }
    %c0_i32_12 = arith.constant 0 : i32
    %17 = arith.cmpi eq, %arg1, %c0_i32_12 : i32
    %18 = arith.extui %17 : i1 to i32
    %c0_i32_13 = arith.constant 0 : i32
    %19 = arith.cmpi ne, %18, %c0_i32_13 : i32
    scf.if %19 {
      %cst_76 = arith.constant 0.000000e+00 : bf16
      %125 = vector.broadcast %cst_76 : bf16 to vector<1x1x16x48xbf16>
      %c0_77 = arith.constant 0 : index
      %c0_78 = arith.constant 0 : index
      %c8_79 = arith.constant 8 : index
      %c0_80 = arith.constant 0 : index
      %126 = vector.load %arg12[%c0_77, %c0_78, %c8_79, %c0_80] : memref<1x6x32x48xbf16, #tpu.memory_space<vmem>>, vector<1x1x16x48xbf16>
      tpu.vector_store %arg12[%c0_77, %c0_78, %c8_79, %c0_80], %125 {strides = array<i32>} : memref<1x6x32x48xbf16, #tpu.memory_space<vmem>>, vector<1x1x16x48xbf16>,
    } else {
    }
    %c3_i32 = arith.constant 3 : i32
    %20 = arith.cmpi slt, %arg1, %c3_i32 : i32
    %21 = arith.extui %20 : i1 to i32
    %c0_i32_14 = arith.constant 0 : i32
    %22 = arith.cmpi ne, %21, %c0_i32_14 : i32
    scf.if %22 {
      %c0_76 = arith.constant 0 : index
      %c0_77 = arith.constant 0 : index
      %c0_78 = arith.constant 0 : index
      %c0_79 = arith.constant 0 : index
      %125 = vector.load %arg4[%c0_76, %c0_77, %c0_78, %c0_79] : memref<1x1x16x8xbf16, #tpu.memory_space<vmem>>, vector<1x1x16x8xbf16>
      %126 = vector.shape_cast %125 : vector<1x1x16x8xbf16> to vector<16x8xbf16>
      %c0_80 = arith.constant 0 : index
      %c0_81 = arith.constant 0 : index
      %127 = vector.load %arg5[%c0_80, %c0_81] : memref<8x48xbf16, #tpu.memory_space<vmem>>, vector<8x48xbf16>
      %cst_82 = arith.constant dense<0.000000e+00> : vector<16x48xf32>
      %128 = tpu.matmul %126, %127, %cst_82 {dimension_numbers = #tpu.dot_dimension_numbers<[1], [0], [0], [1], [0, 0, 1, 1], [], []>} : vector<16x8xbf16>, vector<8x48xbf16>, vector<16x48xf32> -> vector<16x48xf32>
      %c0_83 = arith.constant 0 : index
      %c0_84 = arith.constant 0 : index
      %129 = vector.load %arg6[%c0_83, %c0_84] : memref<1x48xf32, #tpu.memory_space<vmem>>, vector<1x48xf32>
      %130 = vector.broadcast %129 : vector<1x48xf32> to vector<16x48xf32>
      %131 = arith.addf %128, %130 : vector<16x48xf32>
      %cst_85 = arith.constant 0.000000e+00 : f32
      %cst_86 = arith.constant 6.000000e+00 : f32
      %132 = vector.broadcast %cst_85 : f32 to vector<16x48xf32>
      %133 = arith.maximumf %132, %131 : vector<16x48xf32>
      %134 = vector.broadcast %cst_86 : f32 to vector<16x48xf32>
      %135 = arith.minimumf %134, %133 : vector<16x48xf32>
      %136 = vector.shape_cast %135 : vector<16x48xf32> to vector<1x1x16x48xf32>
      %137 = arith.truncf %136 : vector<1x1x16x48xf32> to vector<1x1x16x48xbf16>
      %c0_87 = arith.constant 0 : index
      %c5 = arith.constant 5 : index
      %c8_88 = arith.constant 8 : index
      %c0_89 = arith.constant 0 : index
      %138 = vector.load %arg12[%c0_87, %c5, %c8_88, %c0_89] : memref<1x6x32x48xbf16, #tpu.memory_space<vmem>>, vector<1x1x16x48xbf16>
      tpu.vector_store %arg12[%c0_87, %c5, %c8_88, %c0_89], %137 {strides = array<i32>} : memref<1x6x32x48xbf16, #tpu.memory_space<vmem>>, vector<1x1x16x48xbf16>,
    } else {
    }
    %c3_i32_15 = arith.constant 3 : i32
    %23 = arith.cmpi eq, %arg1, %c3_i32_15 : i32
    %24 = arith.extui %23 : i1 to i32
    %c0_i32_16 = arith.constant 0 : i32
    %25 = arith.cmpi ne, %24, %c0_i32_16 : i32
    scf.if %25 {
      %cst_76 = arith.constant 0.000000e+00 : bf16
      %125 = vector.broadcast %cst_76 : bf16 to vector<1x1x16x48xbf16>
      %c0_77 = arith.constant 0 : index
      %c5 = arith.constant 5 : index
      %c8_78 = arith.constant 8 : index
      %c0_79 = arith.constant 0 : index
      %126 = vector.load %arg12[%c0_77, %c5, %c8_78, %c0_79] : memref<1x6x32x48xbf16, #tpu.memory_space<vmem>>, vector<1x1x16x48xbf16>
      tpu.vector_store %arg12[%c0_77, %c5, %c8_78, %c0_79], %125 {strides = array<i32>} : memref<1x6x32x48xbf16, #tpu.memory_space<vmem>>, vector<1x1x16x48xbf16>,
    } else {
    }
    %cst_17 = arith.constant 0.000000e+00 : bf16
    %26 = vector.broadcast %cst_17 : bf16 to vector<1x6x1x48xbf16>
    %c0_18 = arith.constant 0 : index
    %c0_19 = arith.constant 0 : index
    %c7 = arith.constant 7 : index
    %c0_20 = arith.constant 0 : index
    %27 = vector.load %arg12[%c0_18, %c0_19, %c7, %c0_20] : memref<1x6x32x48xbf16, #tpu.memory_space<vmem>>, vector<1x6x1x48xbf16>
    tpu.vector_store %arg12[%c0_18, %c0_19, %c7, %c0_20], %26 {strides = array<i32>} : memref<1x6x32x48xbf16, #tpu.memory_space<vmem>>, vector<1x6x1x48xbf16>,
    %c0_21 = arith.constant 0 : index
    %c0_22 = arith.constant 0 : index
    %c24 = arith.constant 24 : index
    %c0_23 = arith.constant 0 : index
    %28 = vector.load %arg12[%c0_21, %c0_22, %c24, %c0_23] : memref<1x6x32x48xbf16, #tpu.memory_space<vmem>>, vector<1x6x1x48xbf16>
    tpu.vector_store %arg12[%c0_21, %c0_22, %c24, %c0_23], %26 {strides = array<i32>} : memref<1x6x32x48xbf16, #tpu.memory_space<vmem>>, vector<1x6x1x48xbf16>,
    %c0_24 = arith.constant 0 : index
    %c0_25 = arith.constant 0 : index
    %c0_26 = arith.constant 0 : index
    %29 = vector.load %arg7[%c0_24, %c0_25, %c0_26] : memref<3x3x48xf32, #tpu.memory_space<vmem>>, vector<3x3x48xf32>
    %c0_27 = arith.constant 0 : index
    %c0_28 = arith.constant 0 : index
    %c7_29 = arith.constant 7 : index
    %c0_30 = arith.constant 0 : index
    %30 = vector.load %arg12[%c0_27, %c0_28, %c7_29, %c0_30] : memref<1x6x32x48xbf16, #tpu.memory_space<vmem>>, vector<1x4x16x48xbf16>
    %31 = arith.extf %30 : vector<1x4x16x48xbf16> to vector<1x4x16x48xf32>
    %32 = vector.extract_strided_slice %29 {offsets = [0, 0, 0], sizes = [1, 1, 48], strides = [1, 1, 1]} : vector<3x3x48xf32> to vector<1x1x48xf32>
    %33 = vector.shape_cast %32 : vector<1x1x48xf32> to vector<48xf32>
    %34 = vector.shape_cast %33 : vector<48xf32> to vector<1x1x1x48xf32>
    %35 = vector.broadcast %34 : vector<1x1x1x48xf32> to vector<1x4x16x48xf32>
    %36 = arith.mulf %31, %35 : vector<1x4x16x48xf32>
    %c0_31 = arith.constant 0 : index
    %c0_32 = arith.constant 0 : index
    %c8_33 = arith.constant 8 : index
    %c0_34 = arith.constant 0 : index
    %37 = vector.load %arg12[%c0_31, %c0_32, %c8_33, %c0_34] : memref<1x6x32x48xbf16, #tpu.memory_space<vmem>>, vector<1x4x16x48xbf16>
    %38 = arith.extf %37 : vector<1x4x16x48xbf16> to vector<1x4x16x48xf32>
    %39 = vector.extract_strided_slice %29 {offsets = [0, 1, 0], sizes = [1, 1, 48], strides = [1, 1, 1]} : vector<3x3x48xf32> to vector<1x1x48xf32>
    %40 = vector.shape_cast %39 : vector<1x1x48xf32> to vector<48xf32>
    %41 = vector.shape_cast %40 : vector<48xf32> to vector<1x1x1x48xf32>
    %42 = vector.broadcast %41 : vector<1x1x1x48xf32> to vector<1x4x16x48xf32>
    %43 = arith.mulf %38, %42 : vector<1x4x16x48xf32>
    %44 = arith.addf %36, %43 : vector<1x4x16x48xf32>
    %c0_35 = arith.constant 0 : index
    %c0_36 = arith.constant 0 : index
    %c9 = arith.constant 9 : index
    %c0_37 = arith.constant 0 : index
    %45 = vector.load %arg12[%c0_35, %c0_36, %c9, %c0_37] : memref<1x6x32x48xbf16, #tpu.memory_space<vmem>>, vector<1x4x16x48xbf16>
    %46 = arith.extf %45 : vector<1x4x16x48xbf16> to vector<1x4x16x48xf32>
    %47 = vector.extract_strided_slice %29 {offsets = [0, 2, 0], sizes = [1, 1, 48], strides = [1, 1, 1]} : vector<3x3x48xf32> to vector<1x1x48xf32>
    %48 = vector.shape_cast %47 : vector<1x1x48xf32> to vector<48xf32>
    %49 = vector.shape_cast %48 : vector<48xf32> to vector<1x1x1x48xf32>
    %50 = vector.broadcast %49 : vector<1x1x1x48xf32> to vector<1x4x16x48xf32>
    %51 = arith.mulf %46, %50 : vector<1x4x16x48xf32>
    %52 = arith.addf %44, %51 : vector<1x4x16x48xf32>
    %c0_38 = arith.constant 0 : index
    %c1_39 = arith.constant 1 : index
    %c7_40 = arith.constant 7 : index
    %c0_41 = arith.constant 0 : index
    %53 = vector.load %arg12[%c0_38, %c1_39, %c7_40, %c0_41] : memref<1x6x32x48xbf16, #tpu.memory_space<vmem>>, vector<1x4x16x48xbf16>
    %54 = arith.extf %53 : vector<1x4x16x48xbf16> to vector<1x4x16x48xf32>
    %55 = vector.extract_strided_slice %29 {offsets = [1, 0, 0], sizes = [1, 1, 48], strides = [1, 1, 1]} : vector<3x3x48xf32> to vector<1x1x48xf32>
    %56 = vector.shape_cast %55 : vector<1x1x48xf32> to vector<48xf32>
    %57 = vector.shape_cast %56 : vector<48xf32> to vector<1x1x1x48xf32>
    %58 = vector.broadcast %57 : vector<1x1x1x48xf32> to vector<1x4x16x48xf32>
    %59 = arith.mulf %54, %58 : vector<1x4x16x48xf32>
    %60 = arith.addf %52, %59 : vector<1x4x16x48xf32>
    %c0_42 = arith.constant 0 : index
    %c1_43 = arith.constant 1 : index
    %c8_44 = arith.constant 8 : index
    %c0_45 = arith.constant 0 : index
    %61 = vector.load %arg12[%c0_42, %c1_43, %c8_44, %c0_45] : memref<1x6x32x48xbf16, #tpu.memory_space<vmem>>, vector<1x4x16x48xbf16>
    %62 = arith.extf %61 : vector<1x4x16x48xbf16> to vector<1x4x16x48xf32>
    %63 = vector.extract_strided_slice %29 {offsets = [1, 1, 0], sizes = [1, 1, 48], strides = [1, 1, 1]} : vector<3x3x48xf32> to vector<1x1x48xf32>
    %64 = vector.shape_cast %63 : vector<1x1x48xf32> to vector<48xf32>
    %65 = vector.shape_cast %64 : vector<48xf32> to vector<1x1x1x48xf32>
    %66 = vector.broadcast %65 : vector<1x1x1x48xf32> to vector<1x4x16x48xf32>
    %67 = arith.mulf %62, %66 : vector<1x4x16x48xf32>
    %68 = arith.addf %60, %67 : vector<1x4x16x48xf32>
    %c0_46 = arith.constant 0 : index
    %c1_47 = arith.constant 1 : index
    %c9_48 = arith.constant 9 : index
    %c0_49 = arith.constant 0 : index
    %69 = vector.load %arg12[%c0_46, %c1_47, %c9_48, %c0_49] : memref<1x6x32x48xbf16, #tpu.memory_space<vmem>>, vector<1x4x16x48xbf16>
    %70 = arith.extf %69 : vector<1x4x16x48xbf16> to vector<1x4x16x48xf32>
    %71 = vector.extract_strided_slice %29 {offsets = [1, 2, 0], sizes = [1, 1, 48], strides = [1, 1, 1]} : vector<3x3x48xf32> to vector<1x1x48xf32>
    %72 = vector.shape_cast %71 : vector<1x1x48xf32> to vector<48xf32>
    %73 = vector.shape_cast %72 : vector<48xf32> to vector<1x1x1x48xf32>
    %74 = vector.broadcast %73 : vector<1x1x1x48xf32> to vector<1x4x16x48xf32>
    %75 = arith.mulf %70, %74 : vector<1x4x16x48xf32>
    %76 = arith.addf %68, %75 : vector<1x4x16x48xf32>
    %c0_50 = arith.constant 0 : index
    %c2 = arith.constant 2 : index
    %c7_51 = arith.constant 7 : index
    %c0_52 = arith.constant 0 : index
    %77 = vector.load %arg12[%c0_50, %c2, %c7_51, %c0_52] : memref<1x6x32x48xbf16, #tpu.memory_space<vmem>>, vector<1x4x16x48xbf16>
    %78 = arith.extf %77 : vector<1x4x16x48xbf16> to vector<1x4x16x48xf32>
    %79 = vector.extract_strided_slice %29 {offsets = [2, 0, 0], sizes = [1, 1, 48], strides = [1, 1, 1]} : vector<3x3x48xf32> to vector<1x1x48xf32>
    %80 = vector.shape_cast %79 : vector<1x1x48xf32> to vector<48xf32>
    %81 = vector.shape_cast %80 : vector<48xf32> to vector<1x1x1x48xf32>
    %82 = vector.broadcast %81 : vector<1x1x1x48xf32> to vector<1x4x16x48xf32>
    %83 = arith.mulf %78, %82 : vector<1x4x16x48xf32>
    %84 = arith.addf %76, %83 : vector<1x4x16x48xf32>
    %c0_53 = arith.constant 0 : index
    %c2_54 = arith.constant 2 : index
    %c8_55 = arith.constant 8 : index
    %c0_56 = arith.constant 0 : index
    %85 = vector.load %arg12[%c0_53, %c2_54, %c8_55, %c0_56] : memref<1x6x32x48xbf16, #tpu.memory_space<vmem>>, vector<1x4x16x48xbf16>
    %86 = arith.extf %85 : vector<1x4x16x48xbf16> to vector<1x4x16x48xf32>
    %87 = vector.extract_strided_slice %29 {offsets = [2, 1, 0], sizes = [1, 1, 48], strides = [1, 1, 1]} : vector<3x3x48xf32> to vector<1x1x48xf32>
    %88 = vector.shape_cast %87 : vector<1x1x48xf32> to vector<48xf32>
    %89 = vector.shape_cast %88 : vector<48xf32> to vector<1x1x1x48xf32>
    %90 = vector.broadcast %89 : vector<1x1x1x48xf32> to vector<1x4x16x48xf32>
    %91 = arith.mulf %86, %90 : vector<1x4x16x48xf32>
    %92 = arith.addf %84, %91 : vector<1x4x16x48xf32>
    %c0_57 = arith.constant 0 : index
    %c2_58 = arith.constant 2 : index
    %c9_59 = arith.constant 9 : index
    %c0_60 = arith.constant 0 : index
    %93 = vector.load %arg12[%c0_57, %c2_58, %c9_59, %c0_60] : memref<1x6x32x48xbf16, #tpu.memory_space<vmem>>, vector<1x4x16x48xbf16>
    %94 = arith.extf %93 : vector<1x4x16x48xbf16> to vector<1x4x16x48xf32>
    %95 = vector.extract_strided_slice %29 {offsets = [2, 2, 0], sizes = [1, 1, 48], strides = [1, 1, 1]} : vector<3x3x48xf32> to vector<1x1x48xf32>
    %96 = vector.shape_cast %95 : vector<1x1x48xf32> to vector<48xf32>
    %97 = vector.shape_cast %96 : vector<48xf32> to vector<1x1x1x48xf32>
    %98 = vector.broadcast %97 : vector<1x1x1x48xf32> to vector<1x4x16x48xf32>
    %99 = arith.mulf %94, %98 : vector<1x4x16x48xf32>
    %100 = arith.addf %92, %99 : vector<1x4x16x48xf32>
    %c0_61 = arith.constant 0 : index
    %c0_62 = arith.constant 0 : index
    %101 = vector.load %arg8[%c0_61, %c0_62] : memref<1x48xf32, #tpu.memory_space<vmem>>, vector<1x48xf32>
    %102 = vector.shape_cast %101 : vector<1x48xf32> to vector<1x1x1x48xf32>
    %103 = vector.broadcast %102 : vector<1x1x1x48xf32> to vector<1x4x16x48xf32>
    %104 = arith.addf %100, %103 : vector<1x4x16x48xf32>
    %cst_63 = arith.constant 0.000000e+00 : f32
    %cst_64 = arith.constant 6.000000e+00 : f32
    %105 = vector.broadcast %cst_63 : f32 to vector<1x4x16x48xf32>
    %106 = arith.maximumf %105, %104 : vector<1x4x16x48xf32>
    %107 = vector.broadcast %cst_64 : f32 to vector<1x4x16x48xf32>
    %108 = arith.minimumf %107, %106 : vector<1x4x16x48xf32>
    %109 = vector.shape_cast %108 : vector<1x4x16x48xf32> to vector<64x48xf32>
    %110 = arith.truncf %109 : vector<64x48xf32> to vector<64x48xbf16>
    %c0_65 = arith.constant 0 : index
    %c0_66 = arith.constant 0 : index
    %111 = vector.load %arg9[%c0_65, %c0_66] : memref<48x8xbf16, #tpu.memory_space<vmem>>, vector<48x8xbf16>
    %cst_67 = arith.constant dense<0.000000e+00> : vector<64x8xf32>
    %112 = tpu.matmul %110, %111, %cst_67 {dimension_numbers = #tpu.dot_dimension_numbers<[1], [0], [0], [1], [0, 0, 1, 1], [], []>} : vector<64x48xbf16>, vector<48x8xbf16>, vector<64x8xf32> -> vector<64x8xf32>
    %c0_68 = arith.constant 0 : index
    %c0_69 = arith.constant 0 : index
    %113 = vector.load %arg10[%c0_68, %c0_69] : memref<1x8xf32, #tpu.memory_space<vmem>>, vector<1x8xf32>
    %114 = vector.broadcast %113 : vector<1x8xf32> to vector<64x8xf32>
    %115 = arith.addf %112, %114 : vector<64x8xf32>
    %cst_70 = arith.constant 0.000000e+00 : f32
    %cst_71 = arith.constant 6.000000e+00 : f32
    %116 = vector.broadcast %cst_70 : f32 to vector<64x8xf32>
    %117 = arith.maximumf %116, %115 : vector<64x8xf32>
    %118 = vector.broadcast %cst_71 : f32 to vector<64x8xf32>
    %119 = arith.minimumf %118, %117 : vector<64x8xf32>
    %120 = vector.shape_cast %119 : vector<64x8xf32> to vector<1x4x16x8xf32>
    %121 = arith.extf %0 : vector<1x4x16x8xbf16> to vector<1x4x16x8xf32>
    %122 = arith.addf %120, %121 : vector<1x4x16x8xf32>
    %123 = arith.truncf %122 : vector<1x4x16x8xf32> to vector<1x4x16x8xbf16>
    %c0_72 = arith.constant 0 : index
    %c0_73 = arith.constant 0 : index
    %c0_74 = arith.constant 0 : index
    %c0_75 = arith.constant 0 : index
    %124 = vector.load %arg11[%c0_72, %c0_73, %c0_74, %c0_75] : memref<1x4x16x8xbf16, #tpu.memory_space<vmem>>, vector<1x4x16x8xbf16>
    tpu.vector_store %arg11[%c0_72, %c0_73, %c0_74, %c0_75], %123 {strides = array<i32>} : memref<1x4x16x8xbf16, #tpu.memory_space<vmem>>, vector<1x4x16x8xbf16>,
    return
  }
  func.func @transform_0(%arg0: i32, %arg1: i32) -> (i32, i32, i32, i32) {
    %c0_i32 = arith.constant 0 : i32
    %c0_i32_0 = arith.constant 0 : i32
    %c0_i32_1 = arith.constant 0 : i32
    return %arg0, %arg1, %c0_i32, %c0_i32_0 : i32, i32, i32, i32
  }
  func.func @transform_1(%arg0: i32, %arg1: i32) -> (i32, i32, i32, i32) {
    %c4_i32 = arith.constant 4 : i32
    %0 = arith.muli %arg1, %c4_i32 : i32
    %c1_i32 = arith.constant 1 : i32
    %1 = arith.subi %0, %c1_i32 : i32
    %c0_i32 = arith.constant 0 : i32
    %2 = arith.maxsi %1, %c0_i32 : i32
    %c0_i32_0 = arith.constant 0 : i32
    %c0_i32_1 = arith.constant 0 : i32
    %c0_i32_2 = arith.constant 0 : i32
    return %arg0, %2, %c0_i32_0, %c0_i32_1 : i32, i32, i32, i32
  }
  func.func @transform_2(%arg0: i32, %arg1: i32) -> (i32, i32, i32, i32) {
    %c1_i32 = arith.constant 1 : i32
    %0 = arith.addi %arg1, %c1_i32 : i32
    %c4_i32 = arith.constant 4 : i32
    %1 = arith.muli %0, %c4_i32 : i32
    %c15_i32 = arith.constant 15 : i32
    %2 = arith.minsi %1, %c15_i32 : i32
    %c0_i32 = arith.constant 0 : i32
    %c0_i32_0 = arith.constant 0 : i32
    %c0_i32_1 = arith.constant 0 : i32
    return %arg0, %2, %c0_i32, %c0_i32_0 : i32, i32, i32, i32
  }
  func.func @transform_3(%arg0: i32, %arg1: i32) -> (i32, i32) {
    %c0_i32 = arith.constant 0 : i32
    %c0_i32_0 = arith.constant 0 : i32
    %c0_i32_1 = arith.constant 0 : i32
    return %c0_i32, %c0_i32_0 : i32, i32
  }
  func.func @transform_4(%arg0: i32, %arg1: i32) -> (i32, i32) {
    %c0_i32 = arith.constant 0 : i32
    %c0_i32_0 = arith.constant 0 : i32
    %c0_i32_1 = arith.constant 0 : i32
    return %c0_i32, %c0_i32_0 : i32, i32
  }
  func.func @transform_5(%arg0: i32, %arg1: i32) -> (i32, i32, i32) {
    %c0_i32 = arith.constant 0 : i32
    %c0_i32_0 = arith.constant 0 : i32
    %c0_i32_1 = arith.constant 0 : i32
    %c0_i32_2 = arith.constant 0 : i32
    return %c0_i32, %c0_i32_0, %c0_i32_1 : i32, i32, i32
  }
  func.func @transform_6(%arg0: i32, %arg1: i32) -> (i32, i32) {
    %c0_i32 = arith.constant 0 : i32
    %c0_i32_0 = arith.constant 0 : i32
    %c0_i32_1 = arith.constant 0 : i32
    return %c0_i32, %c0_i32_0 : i32, i32
  }
  func.func @transform_7(%arg0: i32, %arg1: i32) -> (i32, i32) {
    %c0_i32 = arith.constant 0 : i32
    %c0_i32_0 = arith.constant 0 : i32
    %c0_i32_1 = arith.constant 0 : i32
    return %c0_i32, %c0_i32_0 : i32, i32
  }
  func.func @transform_8(%arg0: i32, %arg1: i32) -> (i32, i32) {
    %c0_i32 = arith.constant 0 : i32
    %c0_i32_0 = arith.constant 0 : i32
    %c0_i32_1 = arith.constant 0 : i32
    return %c0_i32, %c0_i32_0 : i32, i32
  }
  func.func @transform_9(%arg0: i32, %arg1: i32) -> (i32, i32, i32, i32) {
    %c0_i32 = arith.constant 0 : i32
    %c0_i32_0 = arith.constant 0 : i32
    %c0_i32_1 = arith.constant 0 : i32
    return %arg0, %arg1, %c0_i32, %c0_i32_0 : i32, i32, i32, i32
  }
}

</mosaic_0001>

<llo_original>
// kernel: tpu_custom_call.1
$region0: #{tpu_custom_call.1}
  #allocation0 [shape = 'u32[]', space=smem, size = 0x4, offset = 0x4, fixed_abs, tag = 'smem constant byte address 0x4 - core index']
  #allocation1 [shape = 'u32[144,128]{1,0:T(1,128)}', space=vmem, size = 0x12000, scoped, tag = 'internal scratch']
  #allocation2 [shape = 'bf16[1,6,32,48]{3,2,1,0:T(8,128)(2,1)}', space=vmem, size = 0xc000, scoped, tag = 'scratch operand']
  %s0 = inlined_call_operand.vmem [shape: bf16[2,16,16,8], index: 0, kind: input, shape index: {}]
  %s1 = inlined_call_operand.vmem [shape: bf16[2,16,16,8], index: 1, kind: input, shape index: {}]
  %s2 = inlined_call_operand.vmem [shape: bf16[2,16,16,8], index: 2, kind: input, shape index: {}]
  %s3 = inlined_call_operand.vmem [shape: bf16[8,48], index: 3, kind: input, shape index: {}]
  %s4 = inlined_call_operand.vmem [shape: f32[1,48], index: 4, kind: input, shape index: {}]
  %s5 = inlined_call_operand.vmem [shape: f32[3,3,48], index: 5, kind: input, shape index: {}]
  %s6 = inlined_call_operand.vmem [shape: f32[1,48], index: 6, kind: input, shape index: {}]
  %s7 = inlined_call_operand.vmem [shape: bf16[48,8], index: 7, kind: input, shape index: {}]
  %s8 = inlined_call_operand.vmem [shape: f32[1,8], index: 8, kind: input, shape index: {}]
  %s9 = inlined_call_operand.vmem [shape: bf16[2,16,16,8], index: 9, kind: output, shape index: {}]
  %s10 = sld [smem:[#allocation0]]
  $region85: #{tpu_custom_call.1} parent=0
    _
  %s12 = ssub.s32 1, %s10
  %s13 = scalar_select 0, %s12, %s10
  loop: start=0, step=1, limit=10
  $region2: #{tpu_custom_call.1} parent=0 // loop_pre_header
    _
  $region3: #{tpu_custom_call.1} parent=0 // loop_header
    %s15 = sphi 0, %s19
    %p16 = scmp.ge.s32.totalorder %s15, 10
    %s22 = sphi 0, %s34
    %s23 = sphi 0, %s30
    %s24 = sphi 0, %s22
    %s25 = sphi 0, %s23
    %s26 = sphi 0, %s24
    %s27 = sphi 0, %s25
    %s39 = sphi 0, %s41
    %s42 = sphi 0, %s39
    %s43 = sphi 0, %s42
    %s59 = sphi 0, %s43
    %s75 = sphi 0, %s77
    %s78 = sphi 0, %s75
    %s79 = sphi 0, %s78
    %s95 = sphi 0, %s79
    %s111 = sphi 0, %s113
    %s114 = sphi 0, %s111
    %s115 = sphi 0, %s114
    %s131 = sphi 0, %s115
    %s135 = sphi 0, %s135
    %s137 = sphi 0, %s135
    %s138 = sphi 0, %s137
    %s152 = sphi 0, %s138
    %s156 = sphi 0, %s156
    %s158 = sphi 0, %s156
    %s159 = sphi 0, %s158
    %s173 = sphi 0, %s159
    %s177 = sphi 0, %s177
    %s179 = sphi 0, %s177
    %s180 = sphi 0, %s179
    %s194 = sphi 0, %s180
    %s198 = sphi 0, %s198
    %s200 = sphi 0, %s198
    %s201 = sphi 0, %s200
    %s215 = sphi 0, %s201
    %s219 = sphi 0, %s219
    %s221 = sphi 0, %s219
    %s222 = sphi 0, %s221
    %s236 = sphi 0, %s222
    %s240 = sphi 0, %s240
    %s242 = sphi 0, %s240
    %s243 = sphi 0, %s242
    %s257 = sphi 0, %s243
    %s265 = sphi 0, %s267
    %s268 = sphi 0, %s265
    %s269 = sphi 0, %s268
    %s285 = sphi 0, %s269
  $region4: #{tpu_custom_call.1} parent=0 // loop_header_branch
    %18 = sbr.rel (%p16) target = $region8
  $region5: #{tpu_custom_call.1} parent=0 // loop_body
    %s20 = ssub.s32 %s15, 1
    %s21 = ssub.s32 %s15, 2
    %s28 = sadd.s32 1, %s23
    %p29 = scmp.ge.s32.totalorder %s28, 4
    %s30 = scalar_select %p29, 0, %s28
    %s31 = sadd.s32 1, %s22
    %s32 = scalar_select %p29, %s31, %s22
    %p33 = scmp.ge.s32.totalorder %s32, 2
    %s34 = scalar_select %p33, 0, %s32
    %s35 = ssub.s32 %s22, %s34
    %s36 = ssub.s32 %s23, %s30
    %s37 = sor.u32 %s35, %s36
    %p38 = scmp.eq.s32.totalorder %s37, 0
    %s40 = sadd.s32 %s39, 1
    %s41 = scalar_select %p38, %s39, %s40
    %p44 = pneg %p38
    %p45 = scmp.eq.s32.totalorder %s15, 7
    %p46 = por %p44, %p45
    %p47 = scmp.ne.s32.totalorder %s39, %s42
    %p48 = scmp.eq.s32.totalorder %s15, 0
    %p49 = por %p47, %p48
    %p50 = scmp.ne.s32.totalorder %s39, %s42
    %p51 = scmp.eq.s32.totalorder %s20, 7
    %p52 = por %p50, %p51
    %p53 = scmp.ne.s32.totalorder %s42, %s43
    %p54 = scmp.eq.s32.totalorder %s20, 0
    %p55 = por %p53, %p54
    %p56 = scmp.ne.s32.totalorder %s42, %s43
    %p57 = scmp.eq.s32.totalorder %s21, 7
    %p58 = por %p56, %p57
    %p60 = scmp.ne.s32.totalorder %s43, %s59
    %p61 = scmp.eq.s32.totalorder %s21, 0
    %p62 = por %p60, %p61
    %s63 = smul.u32 %s23, 4
    %s64 = ssub.s32 %s63, 1
    %p65 = scmp.gt.s32.totalorder %s64, 0
    %s66 = scalar_select %p65, %s64, 0
    %s67 = smul.u32 %s30, 4
    %s68 = ssub.s32 %s67, 1
    %p69 = scmp.gt.s32.totalorder %s68, 0
    %s70 = scalar_select %p69, %s68, 0
    %s71 = ssub.s32 %s22, %s34
    %s72 = ssub.s32 %s66, %s70
    %s73 = sor.u32 %s71, %s72
    %p74 = scmp.eq.s32.totalorder %s73, 0
    %s76 = sadd.s32 %s75, 1
    %s77 = scalar_select %p74, %s75, %s76
    %p80 = pneg %p74
    %p81 = scmp.eq.s32.totalorder %s15, 7
    %p82 = por %p80, %p81
    %p83 = scmp.ne.s32.totalorder %s75, %s78
    %p84 = scmp.eq.s32.totalorder %s15, 0
    %p85 = por %p83, %p84
    %p86 = scmp.ne.s32.totalorder %s75, %s78
    %p87 = scmp.eq.s32.totalorder %s20, 7
    %p88 = por %p86, %p87
    %p89 = scmp.ne.s32.totalorder %s78, %s79
    %p90 = scmp.eq.s32.totalorder %s20, 0
    %p91 = por %p89, %p90
    %p92 = scmp.ne.s32.totalorder %s78, %s79
    %p93 = scmp.eq.s32.totalorder %s21, 7
    %p94 = por %p92, %p93
    %p96 = scmp.ne.s32.totalorder %s79, %s95
    %p97 = scmp.eq.s32.totalorder %s21, 0
    %p98 = por %p96, %p97
    %s99 = sadd.s32 %s23, 1
    %s100 = smul.u32 %s99, 4
    %p101 = scmp.lt.s32.totalorder %s100, 15
    %s102 = scalar_select %p101, %s100, 15
    %s103 = sadd.s32 %s30, 1
    %s104 = smul.u32 %s103, 4
    %p105 = scmp.lt.s32.totalorder %s104, 15
    %s106 = scalar_select %p105, %s104, 15
    %s107 = ssub.s32 %s22, %s34
    %s108 = ssub.s32 %s102, %s106
    %s109 = sor.u32 %s107, %s108
    %p110 = scmp.eq.s32.totalorder %s109, 0
    %s112 = sadd.s32 %s111, 1
    %s113 = scalar_select %p110, %s111, %s112
    %p116 = pneg %p110
    %p117 = scmp.eq.s32.totalorder %s15, 7
    %p118 = por %p116, %p117
    %p119 = scmp.ne.s32.totalorder %s111, %s114
    %p120 = scmp.eq.s32.totalorder %s15, 0
    %p121 = por %p119, %p120
    %p122 = scmp.ne.s32.totalorder %s111, %s114
    %p123 = scmp.eq.s32.totalorder %s20, 7
    %p124 = por %p122, %p123
    %p125 = scmp.ne.s32.totalorder %s114, %s115
    %p126 = scmp.eq.s32.totalorder %s20, 0
    %p127 = por %p125, %p126
    %p128 = scmp.ne.s32.totalorder %s114, %s115
    %p129 = scmp.eq.s32.totalorder %s21, 7
    %p130 = por %p128, %p129
    %p132 = scmp.ne.s32.totalorder %s115, %s131
    %p133 = scmp.eq.s32.totalorder %s21, 0
    %p134 = por %p132, %p133
    %s136 = sadd.s32 %s135, 1
    %p139 = scmp.eq.s32.totalorder %s15, 7
    %p140 = scmp.ne.s32.totalorder %s135, %s137
    %p141 = scmp.eq.s32.totalorder %s15, 0
    %p142 = por %p140, %p141
    %p143 = scmp.ne.s32.totalorder %s135, %s137
    %p144 = scmp.eq.s32.totalorder %s20, 7
    %p145 = por %p143, %p144
    %p146 = scmp.ne.s32.totalorder %s137, %s138
    %p147 = scmp.eq.s32.totalorder %s20, 0
    %p148 = por %p146, %p147
    %p149 = scmp.ne.s32.totalorder %s137, %s138
    %p150 = scmp.eq.s32.totalorder %s21, 7
    %p151 = por %p149, %p150
    %p153 = scmp.ne.s32.totalorder %s138, %s152
    %p154 = scmp.eq.s32.totalorder %s21, 0
    %p155 = por %p153, %p154
    %s157 = sadd.s32 %s156, 1
    %p160 = scmp.eq.s32.totalorder %s15, 7
    %p161 = scmp.ne.s32.totalorder %s156, %s158
    %p162 = scmp.eq.s32.totalorder %s15, 0
    %p163 = por %p161, %p162
    %p164 = scmp.ne.s32.totalorder %s156, %s158
    %p165 = scmp.eq.s32.totalorder %s20, 7
    %p166 = por %p164, %p165
    %p167 = scmp.ne.s32.totalorder %s158, %s159
    %p168 = scmp.eq.s32.totalorder %s20, 0
    %p169 = por %p167, %p168
    %p170 = scmp.ne.s32.totalorder %s158, %s159
    %p171 = scmp.eq.s32.totalorder %s21, 7
    %p172 = por %p170, %p171
    %p174 = scmp.ne.s32.totalorder %s159, %s173
    %p175 = scmp.eq.s32.totalorder %s21, 0
    %p176 = por %p174, %p175
    %s178 = sadd.s32 %s177, 1
    %p181 = scmp.eq.s32.totalorder %s15, 7
    %p182 = scmp.ne.s32.totalorder %s177, %s179
    %p183 = scmp.eq.s32.totalorder %s15, 0
    %p184 = por %p182, %p183
    %p185 = scmp.ne.s32.totalorder %s177, %s179
    %p186 = scmp.eq.s32.totalorder %s20, 7
    %p187 = por %p185, %p186
    %p188 = scmp.ne.s32.totalorder %s179, %s180
    %p189 = scmp.eq.s32.totalorder %s20, 0
    %p190 = por %p188, %p189
    %p191 = scmp.ne.s32.totalorder %s179, %s180
    %p192 = scmp.eq.s32.totalorder %s21, 7
    %p193 = por %p191, %p192
    %p195 = scmp.ne.s32.totalorder %s180, %s194
    %p196 = scmp.eq.s32.totalorder %s21, 0
    %p197 = por %p195, %p196
    %s199 = sadd.s32 %s198, 1
    %p202 = scmp.eq.s32.totalorder %s15, 7
    %p203 = scmp.ne.s32.totalorder %s198, %s200
    %p204 = scmp.eq.s32.totalorder %s15, 0
    %p205 = por %p203, %p204
    %p206 = scmp.ne.s32.totalorder %s198, %s200
    %p207 = scmp.eq.s32.totalorder %s20, 7
    %p208 = por %p206, %p207
    %p209 = scmp.ne.s32.totalorder %s200, %s201
    %p210 = scmp.eq.s32.totalorder %s20, 0
    %p211 = por %p209, %p210
    %p212 = scmp.ne.s32.totalorder %s200, %s201
    %p213 = scmp.eq.s32.totalorder %s21, 7
    %p214 = por %p212, %p213
    %p216 = scmp.ne.s32.totalorder %s201, %s215
    %p217 = scmp.eq.s32.totalorder %s21, 0
    %p218 = por %p216, %p217
    %s220 = sadd.s32 %s219, 1
    %p223 = scmp.eq.s32.totalorder %s15, 7
    %p224 = scmp.ne.s32.totalorder %s219, %s221
    %p225 = scmp.eq.s32.totalorder %s15, 0
    %p226 = por %p224, %p225
    %p227 = scmp.ne.s32.totalorder %s219, %s221
    %p228 = scmp.eq.s32.totalorder %s20, 7
    %p229 = por %p227, %p228
    %p230 = scmp.ne.s32.totalorder %s221, %s222
    %p231 = scmp.eq.s32.totalorder %s20, 0
    %p232 = por %p230, %p231
    %p233 = scmp.ne.s32.totalorder %s221, %s222
    %p234 = scmp.eq.s32.totalorder %s21, 7
    %p235 = por %p233, %p234
    %p237 = scmp.ne.s32.totalorder %s222, %s236
    %p238 = scmp.eq.s32.totalorder %s21, 0
    %p239 = por %p237, %p238
    %s241 = sadd.s32 %s240, 1
    %p244 = scmp.eq.s32.totalorder %s15, 7
    %p245 = scmp.ne.s32.totalorder %s240, %s242
    %p246 = scmp.eq.s32.totalorder %s15, 0
    %p247 = por %p245, %p246
    %p248 = scmp.ne.s32.totalorder %s240, %s242
    %p249 = scmp.eq.s32.totalorder %s20, 7
    %p250 = por %p248, %p249
    %p251 = scmp.ne.s32.totalorder %s242, %s243
    %p252 = scmp.eq.s32.totalorder %s20, 0
    %p253 = por %p251, %p252
    %p254 = scmp.ne.s32.totalorder %s242, %s243
    %p255 = scmp.eq.s32.totalorder %s21, 7
    %p256 = por %p254, %p255
    %p258 = scmp.ne.s32.totalorder %s243, %s257
    %p259 = scmp.eq.s32.totalorder %s21, 0
    %p260 = por %p258, %p259
    %s261 = ssub.s32 %s22, %s34
    %s262 = ssub.s32 %s23, %s30
    %s263 = sor.u32 %s261, %s262
    %p264 = scmp.eq.s32.totalorder %s263, 0
    %s266 = sadd.s32 %s265, 1
    %s267 = scalar_select %p264, %s265, %s266
    %p270 = pneg %p264
    %p271 = scmp.eq.s32.totalorder %s15, 7
    %p272 = por %p270, %p271
    %p273 = scmp.ne.s32.totalorder %s265, %s268
    %p274 = scmp.eq.s32.totalorder %s15, 0
    %p275 = por %p273, %p274
    %p276 = scmp.ne.s32.totalorder %s265, %s268
    %p277 = scmp.eq.s32.totalorder %s20, 7
    %p278 = por %p276, %p277
    %p279 = scmp.ne.s32.totalorder %s268, %s269
    %p280 = scmp.eq.s32.totalorder %s20, 0
    %p281 = por %p279, %p280
    %p282 = scmp.ne.s32.totalorder %s268, %s269
    %p283 = scmp.eq.s32.totalorder %s21, 7
    %p284 = por %p282, %p283
    %p286 = scmp.ne.s32.totalorder %s269, %s285
    %p287 = scmp.eq.s32.totalorder %s21, 0
    %p288 = por %p286, %p287
    %p289 = scmp.le.s32.totalorder 1, %s15
    %p290 = scmp.lt.s32.totalorder %s15, 9
    %p291 = pnand %p289, %p290
    %p292 = pneg %p291
    // Predicated region
    $region9: #{tpu_custom_call.1} parent=5 // pred_check
      _
    $region10: #{tpu_custom_call.1} parent=5 // pred_check_branch
      %294 = sbr.rel (%p291) target = $region12
    $region11: #{tpu_custom_call.1} parent=5 // pred_region
      %s295 = ssub.s32 %s15, 1
      // Predicated region
      $region13: #{tpu_custom_call.1} parent=11 // pred_check
        %p296 = pneg %p148
      $region14: #{tpu_custom_call.1} parent=11 // pred_check_branch
        %298 = sbr.rel (%p296) target = $region16
      $region15: #{tpu_custom_call.1} parent=11 // pred_region
        _
      $region16: #{tpu_custom_call.1} parent=11 // pred_fallthru
        _
      // Predicated region
      $region17: #{tpu_custom_call.1} parent=11 // pred_check
        %p299 = pneg %p169
      $region18: #{tpu_custom_call.1} parent=11 // pred_check_branch
        %301 = sbr.rel (%p299) target = $region20
      $region19: #{tpu_custom_call.1} parent=11 // pred_region
        _
      $region20: #{tpu_custom_call.1} parent=11 // pred_fallthru
        _
      // Predicated region
      $region21: #{tpu_custom_call.1} parent=11 // pred_check
        %p302 = pneg %p190
      $region22: #{tpu_custom_call.1} parent=11 // pred_check_branch
        %304 = sbr.rel (%p302) target = $region24
      $region23: #{tpu_custom_call.1} parent=11 // pred_region
        _
      $region24: #{tpu_custom_call.1} parent=11 // pred_fallthru
        _
      // Predicated region
      $region25: #{tpu_custom_call.1} parent=11 // pred_check
        %p305 = pneg %p211
      $region26: #{tpu_custom_call.1} parent=11 // pred_check_branch
        %307 = sbr.rel (%p305) target = $region28
      $region27: #{tpu_custom_call.1} parent=11 // pred_region
        _
      $region28: #{tpu_custom_call.1} parent=11 // pred_fallthru
        _
      // Predicated region
      $region29: #{tpu_custom_call.1} parent=11 // pred_check
        %p308 = pneg %p232
      $region30: #{tpu_custom_call.1} parent=11 // pred_check_branch
        %310 = sbr.rel (%p308) target = $region32
      $region31: #{tpu_custom_call.1} parent=11 // pred_region
        _
      $region32: #{tpu_custom_call.1} parent=11 // pred_fallthru
        _
      // Predicated region
      $region33: #{tpu_custom_call.1} parent=11 // pred_check
        %p311 = pneg %p253
      $region34: #{tpu_custom_call.1} parent=11 // pred_check_branch
        %313 = sbr.rel (%p311) target = $region36
      $region35: #{tpu_custom_call.1} parent=11 // pred_region
        _
      $region36: #{tpu_custom_call.1} parent=11 // pred_fallthru
        _
    $region12: #{tpu_custom_call.1} parent=5 // pred_fallthru
      _
    %p314 = scmp.lt.s32.totalorder %s15, 8
    // Predicated region
    $region37: #{tpu_custom_call.1} parent=5 // pred_check
      %p315 = pneg %p314
    $region38: #{tpu_custom_call.1} parent=5 // pred_check_branch
      %317 = sbr.rel (%p315) target = $region40
    $region39: #{tpu_custom_call.1} parent=5 // pred_region
      // Predicated region
      $region41: #{tpu_custom_call.1} parent=39 // pred_check
        %p318 = pneg %p49
      $region42: #{tpu_custom_call.1} parent=39 // pred_check_branch
        %320 = sbr.rel (%p318) target = $region44
      $region43: #{tpu_custom_call.1} parent=39 // pred_region
        %s321 = smul.u32 4, %s23
        %p322 = scmp.lt.s32.totalorder %s22, 1
        %s323 = scalar_select %p322, %s22, 1
        %p324 = scmp.lt.s32.totalorder %s321, 15
        %s325 = scalar_select %p324, %s321, 15
        %s326 = smul.addr %s325, 2
        %s327 = smul.addr %s323, 32
        %s328 = sadd.s32 %s326, %s327
        %s329 = smul.addr %s328, 4
        %s330 = scalar_lea.vmem %s0, %s329
        %s331 = smul.u32 4, %s23
      $region44: #{tpu_custom_call.1} parent=39 // pred_fallthru
        _
      // Predicated region
      $region45: #{tpu_custom_call.1} parent=39 // pred_check
        %p332 = pneg %p85
      $region46: #{tpu_custom_call.1} parent=39 // pred_check_branch
        %334 = sbr.rel (%p332) target = $region48
      $region47: #{tpu_custom_call.1} parent=39 // pred_region
        %s335 = smul.u32 %s23, 4
        %s336 = ssub.s32 %s335, 1
        %p337 = scmp.gt.s32.totalorder %s336, 0
        %s338 = scalar_select %p337, %s336, 0
        %p339 = scmp.lt.s32.totalorder %s22, 1
        %s340 = scalar_select %p339, %s22, 1
        %p341 = scmp.lt.s32.totalorder %s338, 15
        %s342 = scalar_select %p341, %s338, 15
        %s343 = smul.addr %s342, 2
        %s344 = smul.addr %s340, 32
        %s345 = sadd.s32 %s343, %s344
        %s346 = smul.addr %s345, 4
        %s347 = scalar_lea.vmem %s1, %s346
        %s348 = smul.u32 %s23, 4
        %s349 = ssub.s32 %s348, 1
        %p350 = scmp.gt.s32.totalorder %s349, 0
        %s351 = scalar_select %p350, %s349, 0
      $region48: #{tpu_custom_call.1} parent=39 // pred_fallthru
        _
      // Predicated region
      $region49: #{tpu_custom_call.1} parent=39 // pred_check
        %p352 = pneg %p121
      $region50: #{tpu_custom_call.1} parent=39 // pred_check_branch
        %354 = sbr.rel (%p352) target = $region52
      $region51: #{tpu_custom_call.1} parent=39 // pred_region
        %s355 = sadd.s32 %s23, 1
        %s356 = smul.u32 %s355, 4
        %p357 = scmp.lt.s32.totalorder %s356, 15
        %s358 = scalar_select %p357, %s356, 15
        %p359 = scmp.lt.s32.totalorder %s22, 1
        %s360 = scalar_select %p359, %s22, 1
        %p361 = scmp.lt.s32.totalorder %s358, 15
        %s362 = scalar_select %p361, %s358, 15
        %s363 = smul.addr %s362, 2
        %s364 = smul.addr %s360, 32
        %s365 = sadd.s32 %s363, %s364
        %s366 = smul.addr %s365, 4
        %s367 = scalar_lea.vmem %s2, %s366
        %s368 = sadd.s32 %s23, 1
        %s369 = smul.u32 %s368, 4
        %p370 = scmp.lt.s32.totalorder %s369, 15
        %s371 = scalar_select %p370, %s369, 15
      $region52: #{tpu_custom_call.1} parent=39 // pred_fallthru
        _
    $region40: #{tpu_custom_call.1} parent=5 // pred_fallthru
      _
    %p372 = scmp.le.s32.totalorder 1, %s15
    %p373 = scmp.lt.s32.totalorder %s15, 9
    %p374 = pnand %p372, %p373
    %p375 = pneg %p374
    // Predicated region
    $region53: #{tpu_custom_call.1} parent=5 // pred_check
      _
    $region54: #{tpu_custom_call.1} parent=5 // pred_check_branch
      %377 = sbr.rel (%p374) target = $region56
    $region55: #{tpu_custom_call.1} parent=5 // pred_region
      %s378 = ssub.s32 %s15, 1
      %s379 = smul.u32 4, %s25
      %p380 = scmp.lt.s32.totalorder %s24, 1
      %s381 = scalar_select %p380, %s24, 1
      %p382 = scmp.lt.s32.totalorder %s379, 15
      %s383 = scalar_select %p382, %s379, 15
      %s384 = smul.addr %s383, 2
      %s385 = smul.addr %s381, 32
      %s386 = sadd.s32 %s384, %s385
      %s387 = smul.addr %s386, 4
      %s388 = scalar_lea.vmem %s0, %s387
      %p389 = pneg %p55
      %p390 = pneg %p52
      %s391 = smul.u32 %s25, 4
      %s392 = ssub.s32 %s391, 1
      %p393 = scmp.gt.s32.totalorder %s392, 0
      %s394 = scalar_select %p393, %s392, 0
      %p395 = scmp.lt.s32.totalorder %s24, 1
      %s396 = scalar_select %p395, %s24, 1
      %p397 = scmp.lt.s32.totalorder %s394, 15
      %s398 = scalar_select %p397, %s394, 15
      %s399 = smul.addr %s398, 2
      %s400 = smul.addr %s396, 32
      %s401 = sadd.s32 %s399, %s400
      %s402 = smul.addr %s401, 4
      %s403 = scalar_lea.vmem %s1, %s402
      %p404 = pneg %p91
      %p405 = pneg %p88
      %s406 = sadd.s32 %s25, 1
      %s407 = smul.u32 %s406, 4
      %p408 = scmp.lt.s32.totalorder %s407, 15
      %s409 = scalar_select %p408, %s407, 15
      %p410 = scmp.lt.s32.totalorder %s24, 1
      %s411 = scalar_select %p410, %s24, 1
      %p412 = scmp.lt.s32.totalorder %s409, 15
      %s413 = scalar_select %p412, %s409, 15
      %s414 = smul.addr %s413, 2
      %s415 = smul.addr %s411, 32
      %s416 = sadd.s32 %s414, %s415
      %s417 = smul.addr %s416, 4
      %s418 = scalar_lea.vmem %s2, %s417
      %p419 = pneg %p127
      %p420 = pneg %p124
      %p421 = pneg %p148
      %p422 = pneg %p145
      %p423 = pneg %p169
      %p424 = pneg %p166
      %p425 = pneg %p190
      %p426 = pneg %p187
      %p427 = pneg %p211
      %p428 = pneg %p208
      %p429 = pneg %p232
      %p430 = pneg %p229
      %p431 = pneg %p253
      %p432 = pneg %p250
      %p433 = pneg %p281
      %p434 = pneg %p278
      %s435 = smul.u32 4, %s25
      %p436 = scmp.lt.s32.totalorder %s24, 1
      %s437 = scalar_select %p436, %s24, 1
      %p438 = scmp.lt.s32.totalorder %s435, 15
      %s439 = scalar_select %p438, %s435, 15
      %s440 = smul.addr %s439, 2
      %s441 = smul.addr %s437, 32
      %s442 = sadd.s32 %s440, %s441
      %s443 = smul.addr %s442, 4
      %s444 = scalar_lea.vmem %s9, %s443
      %s445 = smul.u32 4, %s25
      %p446 = scmp.lt.s32.totalorder %s24, 1
      %s447 = scalar_select %p446, %s24, 1
      %p448 = scmp.lt.s32.totalorder %s445, 15
      %s449 = scalar_select %p448, %s445, 15
      %s450 = smul.addr %s449, 2
      %s451 = smul.addr %s447, 32
      %s452 = sadd.s32 %s450, %s451
      %s453 = smul.addr %s452, 4
      %s454 = scalar_lea.vmem %s0, %s453
      %s455 = smul.u32 4, %s25
      %s456 = smul.u32 %s25, 4
      %s457 = ssub.s32 %s456, 1
      %p458 = scmp.gt.s32.totalorder %s457, 0
      %s459 = scalar_select %p458, %s457, 0
      %p460 = scmp.lt.s32.totalorder %s24, 1
      %s461 = scalar_select %p460, %s24, 1
      %p462 = scmp.lt.s32.totalorder %s459, 15
      %s463 = scalar_select %p462, %s459, 15
      %s464 = smul.addr %s463, 2
      %s465 = smul.addr %s461, 32
      %s466 = sadd.s32 %s464, %s465
      %s467 = smul.addr %s466, 4
      %s468 = scalar_lea.vmem %s1, %s467
      %s469 = smul.u32 %s25, 4
      %s470 = ssub.s32 %s469, 1
      %p471 = scmp.gt.s32.totalorder %s470, 0
      %s472 = scalar_select %p471, %s470, 0
      %s473 = sadd.s32 %s25, 1
      %s474 = smul.u32 %s473, 4
      %p475 = scmp.lt.s32.totalorder %s474, 15
      %s476 = scalar_select %p475, %s474, 15
      %p477 = scmp.lt.s32.totalorder %s24, 1
      %s478 = scalar_select %p477, %s24, 1
      %p479 = scmp.lt.s32.totalorder %s476, 15
      %s480 = scalar_select %p479, %s476, 15
      %s481 = smul.addr %s480, 2
      %s482 = smul.addr %s478, 32
      %s483 = sadd.s32 %s481, %s482
      %s484 = smul.addr %s483, 4
      %s485 = scalar_lea.vmem %s2, %s484
      %s486 = sadd.s32 %s25, 1
      %s487 = smul.u32 %s486, 4
      %p488 = scmp.lt.s32.totalorder %s487, 15
      %s489 = scalar_select %p488, %s487, 15
      %s490 = smul.u32 4, %s25
      %p491 = scmp.lt.s32.totalorder %s24, 1
      %s492 = scalar_select %p491, %s24, 1
      %p493 = scmp.lt.s32.totalorder %s490, 15
      %s494 = scalar_select %p493, %s490, 15
      %s495 = smul.addr %s494, 2
      %s496 = smul.addr %s492, 32
      %s497 = sadd.s32 %s495, %s496
      %s498 = smul.addr %s497, 4
      %s499 = scalar_lea.vmem %s9, %s498
      %s500 = smul.u32 4, %s25
      %v502 = vld [vmem:[%s454] sm:$0xf]
      %v503 = vld [vmem:[%s454 + $0x4] sm:$0xf]
      %v504 = vld [vmem:[%s454 + $0x8] sm:$0xf]
      %v505 = vld [vmem:[%s454 + $0xc] sm:$0xf]
      %v506 = vld [vmem:[%s454 + $0x10] sm:$0xf]
      %v507 = vld [vmem:[%s454 + $0x14] sm:$0xf]
      %v508 = vld [vmem:[%s454 + $0x18] sm:$0xf]
      %v509 = vld [vmem:[%s454 + $0x1c] sm:$0xf]
      %v510 = vld [vmem:[%s3] sm:$0xf]
      %v511 = vld [vmem:[%s4] sm:$0x1]
      %v513 = vlaneseq
      %v514 = vshrl.u32 %v513, 7
      %v515 = vsub.s32 0, %v514
      %v516 = vrot.slane %v511, %v515
      %v526 = vunpack.c.l.b16 %v502
      %v527 = vunpack.c.l.b16 %v503
      %v528 = vunpack.c.l.b16 %v504
      %v529 = vunpack.c.l.b16 %v505
      %v530 = vunpack.c.l.b16 %v506
      %v531 = vunpack.c.l.b16 %v507
      %v532 = vunpack.c.l.b16 %v508
      %v533 = vunpack.c.l.b16 %v509
      %v534 = vpack.c.b16 %v527, %v526
      %v535 = vpack.c.b16 %v529, %v528
      %v536 = vpack.c.b16 %v531, %v530
      %v537 = vpack.c.b16 %v533, %v532
      %vm538 = vcmask 64512
      %v540 = vsel %vm538, %v534, 0
      %v543 = vsel %vm538, %v535, 0
      %v546 = vsel %vm538, %v536, 0
      %v549 = vsel %vm538, %v537, 0
      %vm551 = vcmask 1043456
      %v553 = vsel %vm551, %v510, 0
      %555 = vmatprep.subr.bf16.mxu0 0
      %556 = vmatpush1.bf16.msra.mxu0 0
      %557 = vmatprep.subr.bf16.mxu0 0
      %558 = vmatpush1.bf16.msra.mxu0 0
      %559 = vmatprep.subr.bf16.mxu0 0
      %560 = vmatpush1.bf16.msra.mxu0 0
      %561 = vmatprep.subr.bf16.mxu0 0
      %562 = vmatpush1.bf16.msra.mxu0 0
      %563 = vmatprep.subr.bf16.mxu0 0
      %564 = vmatpush1.bf16.msra.mxu0 0
      %565 = vmatprep.subr.bf16.mxu0 0
      %566 = vmatpush1.bf16.msra.mxu0 0
      %567 = vmatprep.subr.bf16.mxu0 0
      %568 = vmatpush1.bf16.msra.mxu0 0
      %569 = vmatprep.subr.bf16.mxu0 0
      %570 = vmatpush1.bf16.msra.mxu0 %v553
      %571 = vmatprep.subr.bf16.mxu0 0
      %572 = vmatpush2.bf16.msra.mxu0 0
      %573 = vmatprep.subr.bf16.mxu0 0
      %574 = vmatpush2.bf16.msra.mxu0 0
      %575 = vmatprep.subr.bf16.mxu0 0
      %576 = vmatpush2.bf16.msra.mxu0 0
      %577 = vmatprep.subr.bf16.mxu0 0
      %578 = vmatpush2.bf16.msra.mxu0 0
      %579 = vmatprep.subr.bf16.mxu0 0
      %580 = vmatpush2.bf16.msra.mxu0 0
      %581 = vmatprep.subr.bf16.mxu0 0
      %582 = vmatpush2.bf16.msra.mxu0 0
      %583 = vmatprep.subr.bf16.mxu0 0
      %584 = vmatpush2.bf16.msra.mxu0 0
      %585 = vmatprep.subr.bf16.mxu0 0
      %586 = vmatpush2.bf16.msra.mxu0 0
      %587 = vmatprep.mubr.bf16.mxu0 0
      %588 = vmatmul.mubr.bf16.gmra.mxu0 %v540
      %v589 = vpop.f32.mrf.mxu0
      %v590 = vadd.f32 %v516, %v589
      %v591 = vpop.f32.mrf.mxu0
      %v592 = vpop.f32.mrf.mxu0
      %v593 = vadd.f32 %v516, %v592
      %v594 = vpop.f32.mrf.mxu0
      %595 = vmatprep.mubr.bf16.mxu0 0
      %596 = vmatmul.mubr.bf16.gmra.mxu0 %v543
      %v597 = vpop.f32.mrf.mxu0
      %v598 = vadd.f32 %v516, %v597
      %v599 = vpop.f32.mrf.mxu0
      %v600 = vpop.f32.mrf.mxu0
      %v601 = vadd.f32 %v516, %v600
      %v602 = vpop.f32.mrf.mxu0
      %603 = vmatprep.mubr.bf16.mxu0 0
      %604 = vmatmul.mubr.bf16.gmra.mxu0 %v546
      %v605 = vpop.f32.mrf.mxu0
      %v606 = vadd.f32 %v516, %v605
      %v607 = vpop.f32.mrf.mxu0
      %v608 = vpop.f32.mrf.mxu0
      %v609 = vadd.f32 %v516, %v608
      %v610 = vpop.f32.mrf.mxu0
      %611 = vmatprep.mubr.bf16.mxu0 0
      %612 = vmatmul.mubr.bf16.gmra.mxu0 %v549
      %v613 = vpop.f32.mrf.mxu0
      %v614 = vadd.f32 %v516, %v613
      %v615 = vpop.f32.mrf.mxu0
      %v616 = vpop.f32.mrf.mxu0
      %v617 = vadd.f32 %v516, %v616
      %v618 = vpop.f32.mrf.mxu0
      %619 = vdwg.mxu0
      %v620 = vmax.f32 %v590, 0.0
      %v621 = vmax.f32 %v593, 0.0
      %v622 = vmax.f32 %v598, 0.0
      %v623 = vmax.f32 %v601, 0.0
      %v624 = vmax.f32 %v606, 0.0
      %v625 = vmax.f32 %v609, 0.0
      %v626 = vmax.f32 %v614, 0.0
      %v627 = vmax.f32 %v617, 0.0
      %v628 = vmin.f32 %v620, 6.0
      %v629 = vmin.f32 %v621, 6.0
      %v630 = vmin.f32 %v622, 6.0
      %v631 = vmin.f32 %v623, 6.0
      %v632 = vmin.f32 %v624, 6.0
      %v633 = vmin.f32 %v625, 6.0
      %v634 = vmin.f32 %v626, 6.0
      %v635 = vmin.f32 %v627, 6.0
      %v636 = vpack.c.bf16 %v629, %v628
      %v637 = vpack.c.bf16 %v631, %v630
      %v638 = vpack.c.bf16 %v633, %v632
      %v639 = vpack.c.bf16 %v635, %v634
      %v644 = vunpack.c.l.b16 %v636
      %v645 = vunpack.c.h.b16 %v636
      %v646 = vunpack.c.l.b16 %v637
      %v647 = vunpack.c.h.b16 %v637
      %v648 = vunpack.c.l.b16 %v638
      %v649 = vunpack.c.h.b16 %v638
      %v650 = vunpack.c.l.b16 %v639
      %v651 = vunpack.c.h.b16 %v639
      %v652 = vpack.c.b16 %v644, %v644
      %v653 = vpack.c.b16 %v645, %v645
      %v654 = vpack.c.b16 %v646, %v646
      %v655 = vpack.c.b16 %v647, %v647
      %v656 = vpack.c.b16 %v648, %v648
      %v657 = vpack.c.b16 %v649, %v649
      %v658 = vpack.c.b16 %v650, %v650
      %v659 = vpack.c.b16 %v651, %v651
      %s668 = scalar_lea.vmem [#allocation2], 16
      %vm669 = vcmask 388096
      %670 = vst.msk [vmem:[%s668 + $0x4] sm:$0xf] %vm669, %v652
      %671 = vst.msk [vmem:[%s668 + $0x8] sm:$0xf] %vm669, %v653
      %672 = vst.msk [vmem:[%s668 + $0x14] sm:$0xf] %vm669, %v654
      %673 = vst.msk [vmem:[%s668 + $0x18] sm:$0xf] %vm669, %v655
      %674 = vst.msk [vmem:[%s668 + $0x24] sm:$0xf] %vm669, %v656
      %675 = vst.msk [vmem:[%s668 + $0x28] sm:$0xf] %vm669, %v657
      %676 = vst.msk [vmem:[%s668 + $0x34] sm:$0xf] %vm669, %v658
      %677 = vst.msk [vmem:[%s668 + $0x38] sm:$0xf] %vm669, %v659
      %p678 = scmp.gt.s32.totalorder %s25, 0
      // Predicated region
      $region57: #{tpu_custom_call.1} parent=55 // pred_check
        %p679 = pneg %p678
      $region58: #{tpu_custom_call.1} parent=55 // pred_check_branch
        %681 = sbr.rel (%p679) target = $region60
      $region59: #{tpu_custom_call.1} parent=55 // pred_region
        %v682 = vld [vmem:[%s468] sm:$0xf]
        %v683 = vld [vmem:[%s468 + $0x4] sm:$0xf]
        %v684 = vld [vmem:[%s3] sm:$0xf]
        %v685 = vld [vmem:[%s4] sm:$0x1]
        %v687 = vlaneseq
        %v688 = vshrl.u32 %v687, 7
        %v689 = vsub.s32 0, %v688
        %v690 = vrot.slane %v685, %v689
        %v694 = vunpack.c.l.b16 %v682
        %v695 = vunpack.c.l.b16 %v683
        %v696 = vpack.c.b16 %v695, %v694
        %v698 = vsel %vm538, %v696, 0
        %v701 = vsel %vm551, %v684, 0
        %703 = vmatprep.subr.bf16.mxu0 0
        %704 = vmatpush1.bf16.msra.mxu0 0
        %705 = vmatprep.subr.bf16.mxu0 0
        %706 = vmatpush1.bf16.msra.mxu0 0
        %707 = vmatprep.subr.bf16.mxu0 0
        %708 = vmatpush1.bf16.msra.mxu0 0
        %709 = vmatprep.subr.bf16.mxu0 0
        %710 = vmatpush1.bf16.msra.mxu0 0
        %711 = vmatprep.subr.bf16.mxu0 0
        %712 = vmatpush1.bf16.msra.mxu0 0
        %713 = vmatprep.subr.bf16.mxu0 0
        %714 = vmatpush1.bf16.msra.mxu0 0
        %715 = vmatprep.subr.bf16.mxu0 0
        %716 = vmatpush1.bf16.msra.mxu0 0
        %717 = vmatprep.subr.bf16.mxu0 0
        %718 = vmatpush1.bf16.msra.mxu0 %v701
        %719 = vmatprep.subr.bf16.mxu0 0
        %720 = vmatpush2.bf16.msra.mxu0 0
        %721 = vmatprep.subr.bf16.mxu0 0
        %722 = vmatpush2.bf16.msra.mxu0 0
        %723 = vmatprep.subr.bf16.mxu0 0
        %724 = vmatpush2.bf16.msra.mxu0 0
        %725 = vmatprep.subr.bf16.mxu0 0
        %726 = vmatpush2.bf16.msra.mxu0 0
        %727 = vmatprep.subr.bf16.mxu0 0
        %728 = vmatpush2.bf16.msra.mxu0 0
        %729 = vmatprep.subr.bf16.mxu0 0
        %730 = vmatpush2.bf16.msra.mxu0 0
        %731 = vmatprep.subr.bf16.mxu0 0
        %732 = vmatpush2.bf16.msra.mxu0 0
        %733 = vmatprep.subr.bf16.mxu0 0
        %734 = vmatpush2.bf16.msra.mxu0 0
        %735 = vmatprep.mubr.bf16.mxu0 0
        %736 = vmatmul.mubr.bf16.gmra.mxu0 %v698
        %v737 = vpop.f32.mrf.mxu0
        %v738 = vadd.f32 %v690, %v737
        %v739 = vpop.f32.mrf.mxu0
        %v740 = vpop.f32.mrf.mxu0
        %v741 = vadd.f32 %v690, %v740
        %v742 = vpop.f32.mrf.mxu0
        %743 = vdwg.mxu0
        %v744 = vmax.f32 %v738, 0.0
        %v745 = vmax.f32 %v741, 0.0
        %v746 = vmin.f32 %v744, 6.0
        %v747 = vmin.f32 %v745, 6.0
        %v748 = vpack.c.bf16 %v747, %v746
        %v750 = vunpack.c.l.b16 %v748
        %v751 = vunpack.c.h.b16 %v748
        %v752 = vpack.c.b16 %v750, %v750
        %v753 = vpack.c.b16 %v751, %v751
        %756 = vst.msk [vmem:[#allocation2 + $0x4] sm:$0xf] %vm669, %v752
        %757 = vst.msk [vmem:[#allocation2 + $0x8] sm:$0xf] %vm669, %v753
      $region60: #{tpu_custom_call.1} parent=55 // pred_fallthru
        _
      %p758 = scmp.eq.s32.totalorder %s25, 0
      // Predicated region
      $region61: #{tpu_custom_call.1} parent=55 // pred_check
        %p759 = pneg %p758
      $region62: #{tpu_custom_call.1} parent=55 // pred_check_branch
        %761 = sbr.rel (%p759) target = $region64
      $region63: #{tpu_custom_call.1} parent=55 // pred_region
        %762 = vst.msk [vmem:[#allocation2 + $0x4] sm:$0xf] %vm669, 0
        %763 = vst.msk [vmem:[#allocation2 + $0x8] sm:$0xf] %vm669, 0
      $region64: #{tpu_custom_call.1} parent=55 // pred_fallthru
        _
      %p764 = scmp.lt.s32.totalorder %s25, 3
      // Predicated region
      $region65: #{tpu_custom_call.1} parent=55 // pred_check
        %p765 = pneg %p764
      $region66: #{tpu_custom_call.1} parent=55 // pred_check_branch
        %767 = sbr.rel (%p765) target = $region68
      $region67: #{tpu_custom_call.1} parent=55 // pred_region
        %v768 = vld [vmem:[%s485] sm:$0xf]
        %v769 = vld [vmem:[%s485 + $0x4] sm:$0xf]
        %v770 = vld [vmem:[%s3] sm:$0xf]
        %v771 = vld [vmem:[%s4] sm:$0x1]
        %v773 = vlaneseq
        %v774 = vshrl.u32 %v773, 7
        %v775 = vsub.s32 0, %v774
        %v776 = vrot.slane %v771, %v775
        %v780 = vunpack.c.l.b16 %v768
        %v781 = vunpack.c.l.b16 %v769
        %v782 = vpack.c.b16 %v781, %v780
        %v784 = vsel %vm538, %v782, 0
        %v787 = vsel %vm551, %v770, 0
        %789 = vmatprep.subr.bf16.mxu0 0
        %790 = vmatpush1.bf16.msra.mxu0 0
        %791 = vmatprep.subr.bf16.mxu0 0
        %792 = vmatpush1.bf16.msra.mxu0 0
        %793 = vmatprep.subr.bf16.mxu0 0
        %794 = vmatpush1.bf16.msra.mxu0 0
        %795 = vmatprep.subr.bf16.mxu0 0
        %796 = vmatpush1.bf16.msra.mxu0 0
        %797 = vmatprep.subr.bf16.mxu0 0
        %798 = vmatpush1.bf16.msra.mxu0 0
        %799 = vmatprep.subr.bf16.mxu0 0
        %800 = vmatpush1.bf16.msra.mxu0 0
        %801 = vmatprep.subr.bf16.mxu0 0
        %802 = vmatpush1.bf16.msra.mxu0 0
        %803 = vmatprep.subr.bf16.mxu0 0
        %804 = vmatpush1.bf16.msra.mxu0 %v787
        %805 = vmatprep.subr.bf16.mxu0 0
        %806 = vmatpush2.bf16.msra.mxu0 0
        %807 = vmatprep.subr.bf16.mxu0 0
        %808 = vmatpush2.bf16.msra.mxu0 0
        %809 = vmatprep.subr.bf16.mxu0 0
        %810 = vmatpush2.bf16.msra.mxu0 0
        %811 = vmatprep.subr.bf16.mxu0 0
        %812 = vmatpush2.bf16.msra.mxu0 0
        %813 = vmatprep.subr.bf16.mxu0 0
        %814 = vmatpush2.bf16.msra.mxu0 0
        %815 = vmatprep.subr.bf16.mxu0 0
        %816 = vmatpush2.bf16.msra.mxu0 0
        %817 = vmatprep.subr.bf16.mxu0 0
        %818 = vmatpush2.bf16.msra.mxu0 0
        %819 = vmatprep.subr.bf16.mxu0 0
        %820 = vmatpush2.bf16.msra.mxu0 0
        %821 = vmatprep.mubr.bf16.mxu0 0
        %822 = vmatmul.mubr.bf16.gmra.mxu0 %v784
        %v823 = vpop.f32.mrf.mxu0
        %v824 = vadd.f32 %v776, %v823
        %v825 = vpop.f32.mrf.mxu0
        %v826 = vpop.f32.mrf.mxu0
        %v827 = vadd.f32 %v776, %v826
        %v828 = vpop.f32.mrf.mxu0
        %829 = vdwg.mxu0
        %v830 = vmax.f32 %v824, 0.0
        %v831 = vmax.f32 %v827, 0.0
        %v832 = vmin.f32 %v830, 6.0
        %v833 = vmin.f32 %v831, 6.0
        %v834 = vpack.c.bf16 %v833, %v832
        %v836 = vunpack.c.l.b16 %v834
        %v837 = vunpack.c.h.b16 %v834
        %v838 = vpack.c.b16 %v836, %v836
        %v839 = vpack.c.b16 %v837, %v837
        %s842 = scalar_lea.vmem [#allocation2], 80
        %843 = vst.msk [vmem:[%s842 + $0x4] sm:$0xf] %vm669, %v838
        %844 = vst.msk [vmem:[%s842 + $0x8] sm:$0xf] %vm669, %v839
      $region68: #{tpu_custom_call.1} parent=55 // pred_fallthru
        _
      %p845 = scmp.eq.s32.totalorder %s25, 3
      // Predicated region
      $region69: #{tpu_custom_call.1} parent=55 // pred_check
        %p846 = pneg %p845
      $region70: #{tpu_custom_call.1} parent=55 // pred_check_branch
        %848 = sbr.rel (%p846) target = $region72
      $region71: #{tpu_custom_call.1} parent=55 // pred_region
        %s849 = scalar_lea.vmem [#allocation2], 80
        %850 = vst.msk [vmem:[%s849 + $0x4] sm:$0xf] %vm669, 0
        %851 = vst.msk [vmem:[%s849 + $0x8] sm:$0xf] %vm669, 0
      $region72: #{tpu_custom_call.1} parent=55 // pred_fallthru
        _
      %vm852 = vcmask 388099
      %vm853 = vsmask.f32 7950
      %vm854 = vmand %vm852, %vm853
      %v855 = vld [vmem:[#allocation2] sm:$0x8]
      %v856 = vsel %vm854, 0, %v855
      %857 = vst [vmem:[#allocation2] sm:$0x8] %v856
      %v858 = vld [vmem:[#allocation2 + $0x10] sm:$0x8]
      %v859 = vsel %vm854, 0, %v858
      %860 = vst [vmem:[#allocation2 + $0x10] sm:$0x8] %v859
      %v861 = vld [vmem:[#allocation2 + $0x20] sm:$0x8]
      %v862 = vsel %vm854, 0, %v861
      %863 = vst [vmem:[#allocation2 + $0x20] sm:$0x8] %v862
      %v864 = vld [vmem:[#allocation2 + $0x30] sm:$0x8]
      %v865 = vsel %vm854, 0, %v864
      %866 = vst [vmem:[#allocation2 + $0x30] sm:$0x8] %v865
      %v867 = vld [vmem:[#allocation2 + $0x40] sm:$0x8]
      %v868 = vsel %vm854, 0, %v867
      %869 = vst [vmem:[#allocation2 + $0x40] sm:$0x8] %v868
      %v870 = vld [vmem:[#allocation2 + $0x50] sm:$0x8]
      %v871 = vsel %vm854, 0, %v870
      %872 = vst [vmem:[#allocation2 + $0x50] sm:$0x8] %v871
      %vm873 = vcmask 385024
      %vm874 = vsmask.f32 256
      %vm875 = vmand %vm873, %vm874
      %v876 = vld [vmem:[#allocation2 + $0xc] sm:$0x1]
      %v877 = vsel %vm875, 0, %v876
      %878 = vst [vmem:[#allocation2 + $0xc] sm:$0x1] %v877
      %v879 = vld [vmem:[#allocation2 + $0x1c] sm:$0x1]
      %v880 = vsel %vm875, 0, %v879
      %881 = vst [vmem:[#allocation2 + $0x1c] sm:$0x1] %v880
      %v882 = vld [vmem:[#allocation2 + $0x2c] sm:$0x1]
      %v883 = vsel %vm875, 0, %v882
      %884 = vst [vmem:[#allocation2 + $0x2c] sm:$0x1] %v883
      %v885 = vld [vmem:[#allocation2 + $0x3c] sm:$0x1]
      %v886 = vsel %vm875, 0, %v885
      %887 = vst [vmem:[#allocation2 + $0x3c] sm:$0x1] %v886
      %v888 = vld [vmem:[#allocation2 + $0x4c] sm:$0x1]
      %v889 = vsel %vm875, 0, %v888
      %890 = vst [vmem:[#allocation2 + $0x4c] sm:$0x1] %v889
      %v891 = vld [vmem:[#allocation2 + $0x5c] sm:$0x1]
      %v892 = vsel %vm875, 0, %v891
      %893 = vst [vmem:[#allocation2 + $0x5c] sm:$0x1] %v892
      %v894 = vld [vmem:[%s5] sm:$0x7]
      %v895 = vld [vmem:[%s5 + $0x4] sm:$0x7]
      %v896 = vld [vmem:[%s5 + $0x8] sm:$0x7]
      %v897 = vld [vmem:[#allocation2] sm:$0x8]
      %v898 = vld [vmem:[#allocation2 + $0x4] sm:$0xf]
      %v899 = vld [vmem:[#allocation2 + $0x8] sm:$0xf]
      %v900 = vld [vmem:[#allocation2 + $0x10] sm:$0x8]
      %v901 = vld [vmem:[#allocation2 + $0x14] sm:$0xf]
      %v902 = vld [vmem:[#allocation2 + $0x18] sm:$0xf]
      %v903 = vld [vmem:[#allocation2 + $0x20] sm:$0x8]
      %v904 = vld [vmem:[#allocation2 + $0x24] sm:$0xf]
      %v905 = vld [vmem:[#allocation2 + $0x28] sm:$0xf]
      %v906 = vld [vmem:[#allocation2 + $0x30] sm:$0x8]
      %v907 = vld [vmem:[#allocation2 + $0x34] sm:$0xf]
      %v908 = vld [vmem:[#allocation2 + $0x38] sm:$0xf]
      %v909 = vunpack.c.l.bf16 %v897
      %v910 = vunpack.c.l.bf16 %v898
      %v911 = vunpack.c.l.bf16 %v899
      %v912 = vunpack.c.l.bf16 %v900
      %v913 = vunpack.c.l.bf16 %v901
      %v914 = vunpack.c.l.bf16 %v902
      %v915 = vunpack.c.l.bf16 %v903
      %v916 = vunpack.c.l.bf16 %v904
      %v917 = vunpack.c.l.bf16 %v905
      %v918 = vunpack.c.l.bf16 %v906
      %v919 = vunpack.c.l.bf16 %v907
      %v920 = vunpack.c.l.bf16 %v908
      %v921 = vlaneseq
      %v922 = vshrl.u32 %v921, 7
      %v923 = vsub.s32 0, %v922
      %v924 = vrot.slane %v894, %v923
      %v925 = vmul.f32 %v909, %v924
      %v926 = vmul.f32 %v910, %v924
      %v927 = vmul.f32 %v911, %v924
      %v928 = vmul.f32 %v912, %v924
      %v929 = vmul.f32 %v913, %v924
      %v930 = vmul.f32 %v914, %v924
      %v931 = vmul.f32 %v915, %v924
      %v932 = vmul.f32 %v916, %v924
      %v933 = vmul.f32 %v917, %v924
      %v934 = vmul.f32 %v918, %v924
      %v935 = vmul.f32 %v919, %v924
      %v936 = vmul.f32 %v920, %v924
      %v937 = vlaneseq
      %v938 = vshrl.u32 %v937, 7
      %v939 = vsub.s32 1, %v938
      %v940 = vrot.slane %v894, %v939
      %v941 = vmul.f32 %v910, %v940
      %v942 = vmul.f32 %v911, %v940
      %v943 = vmul.f32 %v913, %v940
      %v944 = vmul.f32 %v914, %v940
      %v945 = vmul.f32 %v916, %v940
      %v946 = vmul.f32 %v917, %v940
      %v947 = vmul.f32 %v919, %v940
      %v948 = vmul.f32 %v920, %v940
      %vm957 = vcmask 1046528
      %v958 = vrot.slane %v941, 1
      %v959 = vrot.slane %v942, 1
      %v960 = vsel %vm957, %v958, %v959
      %v961 = vrot.slane %v943, 1
      %v962 = vrot.slane %v944, 1
      %v963 = vsel %vm957, %v961, %v962
      %v964 = vrot.slane %v945, 1
      %v965 = vrot.slane %v946, 1
      %v966 = vsel %vm957, %v964, %v965
      %v967 = vrot.slane %v947, 1
      %v968 = vrot.slane %v948, 1
      %v969 = vsel %vm957, %v967, %v968
      %v982 = vadd.f32 %v925, %v958
      %v983 = vadd.f32 %v926, %v960
      %v984 = vadd.f32 %v927, %v959
      %v985 = vadd.f32 %v928, %v961
      %v986 = vadd.f32 %v929, %v963
      %v987 = vadd.f32 %v930, %v962
      %v988 = vadd.f32 %v931, %v964
      %v989 = vadd.f32 %v932, %v966
      %v990 = vadd.f32 %v933, %v965
      %v991 = vadd.f32 %v934, %v967
      %v992 = vadd.f32 %v935, %v969
      %v993 = vadd.f32 %v936, %v968
      %v994 = vld [vmem:[#allocation2 + $0xc] sm:$0x1]
      %v995 = vld [vmem:[#allocation2 + $0x1c] sm:$0x1]
      %v996 = vld [vmem:[#allocation2 + $0x2c] sm:$0x1]
      %v997 = vld [vmem:[#allocation2 + $0x3c] sm:$0x1]
      %v998 = vunpack.c.l.bf16 %v994
      %v999 = vunpack.c.l.bf16 %v995
      %v1000 = vunpack.c.l.bf16 %v996
      %v1001 = vunpack.c.l.bf16 %v997
      %v1002 = vlaneseq
      %v1003 = vshrl.u32 %v1002, 7
      %v1004 = vsub.s32 2, %v1003
      %v1005 = vrot.slane %v894, %v1004
      %v1006 = vmul.f32 %v910, %v1005
      %v1007 = vmul.f32 %v911, %v1005
      %v1008 = vmul.f32 %v998, %v1005
      %v1009 = vmul.f32 %v913, %v1005
      %v1010 = vmul.f32 %v914, %v1005
      %v1011 = vmul.f32 %v999, %v1005
      %v1012 = vmul.f32 %v916, %v1005
      %v1013 = vmul.f32 %v917, %v1005
      %v1014 = vmul.f32 %v1000, %v1005
      %v1015 = vmul.f32 %v919, %v1005
      %v1016 = vmul.f32 %v920, %v1005
      %v1017 = vmul.f32 %v1001, %v1005
      %vm1030 = vcmask 1045504
      %v1031 = vrot.slane %v1006, 2
      %v1032 = vrot.slane %v1007, 2
      %v1033 = vsel %vm1030, %v1031, %v1032
      %v1034 = vrot.slane %v1008, 2
      %v1035 = vsel %vm1030, %v1032, %v1034
      %v1036 = vrot.slane %v1009, 2
      %v1037 = vrot.slane %v1010, 2
      %v1038 = vsel %vm1030, %v1036, %v1037
      %v1039 = vrot.slane %v1011, 2
      %v1040 = vsel %vm1030, %v1037, %v1039
      %v1041 = vrot.slane %v1012, 2
      %v1042 = vrot.slane %v1013, 2
      %v1043 = vsel %vm1030, %v1041, %v1042
      %v1044 = vrot.slane %v1014, 2
      %v1045 = vsel %vm1030, %v1042, %v1044
      %v1046 = vrot.slane %v1015, 2
      %v1047 = vrot.slane %v1016, 2
      %v1048 = vsel %vm1030, %v1046, %v1047
      %v1049 = vrot.slane %v1017, 2
      %v1050 = vsel %vm1030, %v1047, %v1049
      %v1063 = vadd.f32 %v982, %v1031
      %v1064 = vadd.f32 %v983, %v1033
      %v1065 = vadd.f32 %v984, %v1035
      %v1066 = vadd.f32 %v985, %v1036
      %v1067 = vadd.f32 %v986, %v1038
      %v1068 = vadd.f32 %v987, %v1040
      %v1069 = vadd.f32 %v988, %v1041
      %v1070 = vadd.f32 %v989, %v1043
      %v1071 = vadd.f32 %v990, %v1045
      %v1072 = vadd.f32 %v991, %v1046
      %v1073 = vadd.f32 %v992, %v1048
      %v1074 = vadd.f32 %v993, %v1050
      %v1075 = vld [vmem:[%s668] sm:$0x8]
      %v1076 = vld [vmem:[%s668 + $0x4] sm:$0xf]
      %v1077 = vld [vmem:[%s668 + $0x8] sm:$0xf]
      %v1078 = vld [vmem:[%s668 + $0x10] sm:$0x8]
      %v1079 = vld [vmem:[%s668 + $0x14] sm:$0xf]
      %v1080 = vld [vmem:[%s668 + $0x18] sm:$0xf]
      %v1081 = vld [vmem:[%s668 + $0x20] sm:$0x8]
      %v1082 = vld [vmem:[%s668 + $0x24] sm:$0xf]
      %v1083 = vld [vmem:[%s668 + $0x28] sm:$0xf]
      %v1084 = vld [vmem:[%s668 + $0x30] sm:$0x8]
      %v1085 = vld [vmem:[%s668 + $0x34] sm:$0xf]
      %v1086 = vld [vmem:[%s668 + $0x38] sm:$0xf]
      %v1087 = vunpack.c.l.bf16 %v1075
      %v1088 = vunpack.c.l.bf16 %v1076
      %v1089 = vunpack.c.l.bf16 %v1077
      %v1090 = vunpack.c.l.bf16 %v1078
      %v1091 = vunpack.c.l.bf16 %v1079
      %v1092 = vunpack.c.l.bf16 %v1080
      %v1093 = vunpack.c.l.bf16 %v1081
      %v1094 = vunpack.c.l.bf16 %v1082
      %v1095 = vunpack.c.l.bf16 %v1083
      %v1096 = vunpack.c.l.bf16 %v1084
      %v1097 = vunpack.c.l.bf16 %v1085
      %v1098 = vunpack.c.l.bf16 %v1086
      %v1099 = vlaneseq
      %v1100 = vshrl.u32 %v1099, 7
      %v1101 = vsub.s32 0, %v1100
      %v1102 = vrot.slane %v895, %v1101
      %v1103 = vmul.f32 %v1087, %v1102
      %v1104 = vmul.f32 %v1088, %v1102
      %v1105 = vmul.f32 %v1089, %v1102
      %v1106 = vmul.f32 %v1090, %v1102
      %v1107 = vmul.f32 %v1091, %v1102
      %v1108 = vmul.f32 %v1092, %v1102
      %v1109 = vmul.f32 %v1093, %v1102
      %v1110 = vmul.f32 %v1094, %v1102
      %v1111 = vmul.f32 %v1095, %v1102
      %v1112 = vmul.f32 %v1096, %v1102
      %v1113 = vmul.f32 %v1097, %v1102
      %v1114 = vmul.f32 %v1098, %v1102
      %v1115 = vadd.f32 %v1063, %v1103
      %v1116 = vadd.f32 %v1064, %v1104
      %v1117 = vadd.f32 %v1065, %v1105
      %v1118 = vadd.f32 %v1066, %v1106
      %v1119 = vadd.f32 %v1067, %v1107
      %v1120 = vadd.f32 %v1068, %v1108
      %v1121 = vadd.f32 %v1069, %v1109
      %v1122 = vadd.f32 %v1070, %v1110
      %v1123 = vadd.f32 %v1071, %v1111
      %v1124 = vadd.f32 %v1072, %v1112
      %v1125 = vadd.f32 %v1073, %v1113
      %v1126 = vadd.f32 %v1074, %v1114
      %v1127 = vlaneseq
      %v1128 = vshrl.u32 %v1127, 7
      %v1129 = vsub.s32 1, %v1128
      %v1130 = vrot.slane %v895, %v1129
      %v1131 = vmul.f32 %v1088, %v1130
      %v1132 = vmul.f32 %v1089, %v1130
      %v1133 = vmul.f32 %v1091, %v1130
      %v1134 = vmul.f32 %v1092, %v1130
      %v1135 = vmul.f32 %v1094, %v1130
      %v1136 = vmul.f32 %v1095, %v1130
      %v1137 = vmul.f32 %v1097, %v1130
      %v1138 = vmul.f32 %v1098, %v1130
      %v1147 = vrot.slane %v1131, 1
      %v1148 = vrot.slane %v1132, 1
      %v1149 = vsel %vm957, %v1147, %v1148
      %v1150 = vrot.slane %v1133, 1
      %v1151 = vrot.slane %v1134, 1
      %v1152 = vsel %vm957, %v1150, %v1151
      %v1153 = vrot.slane %v1135, 1
      %v1154 = vrot.slane %v1136, 1
      %v1155 = vsel %vm957, %v1153, %v1154
      %v1156 = vrot.slane %v1137, 1
      %v1157 = vrot.slane %v1138, 1
      %v1158 = vsel %vm957, %v1156, %v1157
      %v1171 = vadd.f32 %v1115, %v1147
      %v1172 = vadd.f32 %v1116, %v1149
      %v1173 = vadd.f32 %v1117, %v1148
      %v1174 = vadd.f32 %v1118, %v1150
      %v1175 = vadd.f32 %v1119, %v1152
      %v1176 = vadd.f32 %v1120, %v1151
      %v1177 = vadd.f32 %v1121, %v1153
      %v1178 = vadd.f32 %v1122, %v1155
      %v1179 = vadd.f32 %v1123, %v1154
      %v1180 = vadd.f32 %v1124, %v1156
      %v1181 = vadd.f32 %v1125, %v1158
      %v1182 = vadd.f32 %v1126, %v1157
      %v1183 = vld [vmem:[%s668 + $0xc] sm:$0x1]
      %v1184 = vld [vmem:[%s668 + $0x1c] sm:$0x1]
      %v1185 = vld [vmem:[%s668 + $0x2c] sm:$0x1]
      %v1186 = vld [vmem:[%s668 + $0x3c] sm:$0x1]
      %v1187 = vunpack.c.l.bf16 %v1183
      %v1188 = vunpack.c.l.bf16 %v1184
      %v1189 = vunpack.c.l.bf16 %v1185
      %v1190 = vunpack.c.l.bf16 %v1186
      %v1191 = vlaneseq
      %v1192 = vshrl.u32 %v1191, 7
      %v1193 = vsub.s32 2, %v1192
      %v1194 = vrot.slane %v895, %v1193
      %v1195 = vmul.f32 %v1088, %v1194
      %v1196 = vmul.f32 %v1089, %v1194
      %v1197 = vmul.f32 %v1187, %v1194
      %v1198 = vmul.f32 %v1091, %v1194
      %v1199 = vmul.f32 %v1092, %v1194
      %v1200 = vmul.f32 %v1188, %v1194
      %v1201 = vmul.f32 %v1094, %v1194
      %v1202 = vmul.f32 %v1095, %v1194
      %v1203 = vmul.f32 %v1189, %v1194
      %v1204 = vmul.f32 %v1097, %v1194
      %v1205 = vmul.f32 %v1098, %v1194
      %v1206 = vmul.f32 %v1190, %v1194
      %v1219 = vrot.slane %v1195, 2
      %v1220 = vrot.slane %v1196, 2
      %v1221 = vsel %vm1030, %v1219, %v1220
      %v1222 = vrot.slane %v1197, 2
      %v1223 = vsel %vm1030, %v1220, %v1222
      %v1224 = vrot.slane %v1198, 2
      %v1225 = vrot.slane %v1199, 2
      %v1226 = vsel %vm1030, %v1224, %v1225
      %v1227 = vrot.slane %v1200, 2
      %v1228 = vsel %vm1030, %v1225, %v1227
      %v1229 = vrot.slane %v1201, 2
      %v1230 = vrot.slane %v1202, 2
      %v1231 = vsel %vm1030, %v1229, %v1230
      %v1232 = vrot.slane %v1203, 2
      %v1233 = vsel %vm1030, %v1230, %v1232
      %v1234 = vrot.slane %v1204, 2
      %v1235 = vrot.slane %v1205, 2
      %v1236 = vsel %vm1030, %v1234, %v1235
      %v1237 = vrot.slane %v1206, 2
      %v1238 = vsel %vm1030, %v1235, %v1237
      %v1251 = vadd.f32 %v1171, %v1219
      %v1252 = vadd.f32 %v1172, %v1221
      %v1253 = vadd.f32 %v1173, %v1223
      %v1254 = vadd.f32 %v1174, %v1224
      %v1255 = vadd.f32 %v1175, %v1226
      %v1256 = vadd.f32 %v1176, %v1228
      %v1257 = vadd.f32 %v1177, %v1229
      %v1258 = vadd.f32 %v1178, %v1231
      %v1259 = vadd.f32 %v1179, %v1233
      %v1260 = vadd.f32 %v1180, %v1234
      %v1261 = vadd.f32 %v1181, %v1236
      %v1262 = vadd.f32 %v1182, %v1238
      %s1263 = scalar_lea.vmem [#allocation2], 32
      %v1264 = vld [vmem:[%s1263] sm:$0x8]
      %v1265 = vld [vmem:[%s1263 + $0x4] sm:$0xf]
      %v1266 = vld [vmem:[%s1263 + $0x8] sm:$0xf]
      %v1267 = vld [vmem:[%s1263 + $0x10] sm:$0x8]
      %v1268 = vld [vmem:[%s1263 + $0x14] sm:$0xf]
      %v1269 = vld [vmem:[%s1263 + $0x18] sm:$0xf]
      %v1270 = vld [vmem:[%s1263 + $0x20] sm:$0x8]
      %v1271 = vld [vmem:[%s1263 + $0x24] sm:$0xf]
      %v1272 = vld [vmem:[%s1263 + $0x28] sm:$0xf]
      %v1273 = vld [vmem:[%s1263 + $0x30] sm:$0x8]
      %v1274 = vld [vmem:[%s1263 + $0x34] sm:$0xf]
      %v1275 = vld [vmem:[%s1263 + $0x38] sm:$0xf]
      %v1276 = vunpack.c.l.bf16 %v1264
      %v1277 = vunpack.c.l.bf16 %v1265
      %v1278 = vunpack.c.l.bf16 %v1266
      %v1279 = vunpack.c.l.bf16 %v1267
      %v1280 = vunpack.c.l.bf16 %v1268
      %v1281 = vunpack.c.l.bf16 %v1269
      %v1282 = vunpack.c.l.bf16 %v1270
      %v1283 = vunpack.c.l.bf16 %v1271
      %v1284 = vunpack.c.l.bf16 %v1272
      %v1285 = vunpack.c.l.bf16 %v1273
      %v1286 = vunpack.c.l.bf16 %v1274
      %v1287 = vunpack.c.l.bf16 %v1275
      %v1288 = vlaneseq
      %v1289 = vshrl.u32 %v1288, 7
      %v1290 = vsub.s32 0, %v1289
      %v1291 = vrot.slane %v896, %v1290
      %v1292 = vmul.f32 %v1276, %v1291
      %v1293 = vmul.f32 %v1277, %v1291
      %v1294 = vmul.f32 %v1278, %v1291
      %v1295 = vmul.f32 %v1279, %v1291
      %v1296 = vmul.f32 %v1280, %v1291
      %v1297 = vmul.f32 %v1281, %v1291
      %v1298 = vmul.f32 %v1282, %v1291
      %v1299 = vmul.f32 %v1283, %v1291
      %v1300 = vmul.f32 %v1284, %v1291
      %v1301 = vmul.f32 %v1285, %v1291
      %v1302 = vmul.f32 %v1286, %v1291
      %v1303 = vmul.f32 %v1287, %v1291
      %v1304 = vadd.f32 %v1251, %v1292
      %v1305 = vadd.f32 %v1252, %v1293
      %v1306 = vadd.f32 %v1253, %v1294
      %v1307 = vadd.f32 %v1254, %v1295
      %v1308 = vadd.f32 %v1255, %v1296
      %v1309 = vadd.f32 %v1256, %v1297
      %v1310 = vadd.f32 %v1257, %v1298
      %v1311 = vadd.f32 %v1258, %v1299
      %v1312 = vadd.f32 %v1259, %v1300
      %v1313 = vadd.f32 %v1260, %v1301
      %v1314 = vadd.f32 %v1261, %v1302
      %v1315 = vadd.f32 %v1262, %v1303
      %v1316 = vlaneseq
      %v1317 = vshrl.u32 %v1316, 7
      %v1318 = vsub.s32 1, %v1317
      %v1319 = vrot.slane %v896, %v1318
      %v1320 = vmul.f32 %v1277, %v1319
      %v1321 = vmul.f32 %v1278, %v1319
      %v1322 = vmul.f32 %v1280, %v1319
      %v1323 = vmul.f32 %v1281, %v1319
      %v1324 = vmul.f32 %v1283, %v1319
      %v1325 = vmul.f32 %v1284, %v1319
      %v1326 = vmul.f32 %v1286, %v1319
      %v1327 = vmul.f32 %v1287, %v1319
      %v1336 = vrot.slane %v1320, 1
      %v1337 = vrot.slane %v1321, 1
      %v1338 = vsel %vm957, %v1336, %v1337
      %v1339 = vrot.slane %v1322, 1
      %v1340 = vrot.slane %v1323, 1
      %v1341 = vsel %vm957, %v1339, %v1340
      %v1342 = vrot.slane %v1324, 1
      %v1343 = vrot.slane %v1325, 1
      %v1344 = vsel %vm957, %v1342, %v1343
      %v1345 = vrot.slane %v1326, 1
      %v1346 = vrot.slane %v1327, 1
      %v1347 = vsel %vm957, %v1345, %v1346
      %v1360 = vadd.f32 %v1304, %v1336
      %v1361 = vadd.f32 %v1305, %v1338
      %v1362 = vadd.f32 %v1306, %v1337
      %v1363 = vadd.f32 %v1307, %v1339
      %v1364 = vadd.f32 %v1308, %v1341
      %v1365 = vadd.f32 %v1309, %v1340
      %v1366 = vadd.f32 %v1310, %v1342
      %v1367 = vadd.f32 %v1311, %v1344
      %v1368 = vadd.f32 %v1312, %v1343
      %v1369 = vadd.f32 %v1313, %v1345
      %v1370 = vadd.f32 %v1314, %v1347
      %v1371 = vadd.f32 %v1315, %v1346
      %v1372 = vld [vmem:[%s1263 + $0xc] sm:$0x1]
      %v1373 = vld [vmem:[%s1263 + $0x1c] sm:$0x1]
      %v1374 = vld [vmem:[%s1263 + $0x2c] sm:$0x1]
      %v1375 = vld [vmem:[%s1263 + $0x3c] sm:$0x1]
      %v1376 = vunpack.c.l.bf16 %v1372
      %v1377 = vunpack.c.l.bf16 %v1373
      %v1378 = vunpack.c.l.bf16 %v1374
      %v1379 = vunpack.c.l.bf16 %v1375
      %v1380 = vlaneseq
      %v1381 = vshrl.u32 %v1380, 7
      %v1382 = vsub.s32 2, %v1381
      %v1383 = vrot.slane %v896, %v1382
      %v1384 = vmul.f32 %v1277, %v1383
      %v1385 = vmul.f32 %v1278, %v1383
      %v1386 = vmul.f32 %v1376, %v1383
      %v1387 = vmul.f32 %v1280, %v1383
      %v1388 = vmul.f32 %v1281, %v1383
      %v1389 = vmul.f32 %v1377, %v1383
      %v1390 = vmul.f32 %v1283, %v1383
      %v1391 = vmul.f32 %v1284, %v1383
      %v1392 = vmul.f32 %v1378, %v1383
      %v1393 = vmul.f32 %v1286, %v1383
      %v1394 = vmul.f32 %v1287, %v1383
      %v1395 = vmul.f32 %v1379, %v1383
      %v1408 = vrot.slane %v1384, 2
      %v1409 = vrot.slane %v1385, 2
      %v1410 = vsel %vm1030, %v1408, %v1409
      %v1411 = vrot.slane %v1386, 2
      %v1412 = vsel %vm1030, %v1409, %v1411
      %v1413 = vrot.slane %v1387, 2
      %v1414 = vrot.slane %v1388, 2
      %v1415 = vsel %vm1030, %v1413, %v1414
      %v1416 = vrot.slane %v1389, 2
      %v1417 = vsel %vm1030, %v1414, %v1416
      %v1418 = vrot.slane %v1390, 2
      %v1419 = vrot.slane %v1391, 2
      %v1420 = vsel %vm1030, %v1418, %v1419
      %v1421 = vrot.slane %v1392, 2
      %v1422 = vsel %vm1030, %v1419, %v1421
      %v1423 = vrot.slane %v1393, 2
      %v1424 = vrot.slane %v1394, 2
      %v1425 = vsel %vm1030, %v1423, %v1424
      %v1426 = vrot.slane %v1395, 2
      %v1427 = vsel %vm1030, %v1424, %v1426
      %v1440 = vadd.f32 %v1360, %v1408
      %v1441 = vadd.f32 %v1361, %v1410
      %v1442 = vadd.f32 %v1362, %v1412
      %v1443 = vadd.f32 %v1363, %v1413
      %v1444 = vadd.f32 %v1364, %v1415
      %v1445 = vadd.f32 %v1365, %v1417
      %v1446 = vadd.f32 %v1366, %v1418
      %v1447 = vadd.f32 %v1367, %v1420
      %v1448 = vadd.f32 %v1368, %v1422
      %v1449 = vadd.f32 %v1369, %v1423
      %v1450 = vadd.f32 %v1370, %v1425
      %v1451 = vadd.f32 %v1371, %v1427
      %v1452 = vld [vmem:[%s6] sm:$0x1]
      %v1454 = vlaneseq
      %v1455 = vshrl.u32 %v1454, 7
      %v1456 = vsub.s32 0, %v1455
      %v1457 = vrot.slane %v1452, %v1456
      %v1459 = vadd.f32 %v1440, %v1457
      %v1460 = vadd.f32 %v1441, %v1457
      %v1461 = vadd.f32 %v1442, %v1457
      %v1462 = vadd.f32 %v1443, %v1457
      %v1463 = vadd.f32 %v1444, %v1457
      %v1464 = vadd.f32 %v1445, %v1457
      %v1465 = vadd.f32 %v1446, %v1457
      %v1466 = vadd.f32 %v1447, %v1457
      %v1467 = vadd.f32 %v1448, %v1457
      %v1468 = vadd.f32 %v1449, %v1457
      %v1469 = vadd.f32 %v1450, %v1457
      %v1470 = vadd.f32 %v1451, %v1457
      %v1471 = vmax.f32 %v1459, 0.0
      %v1472 = vmax.f32 %v1460, 0.0
      %v1473 = vmax.f32 %v1461, 0.0
      %v1474 = vmax.f32 %v1462, 0.0
      %v1475 = vmax.f32 %v1463, 0.0
      %v1476 = vmax.f32 %v1464, 0.0
      %v1477 = vmax.f32 %v1465, 0.0
      %v1478 = vmax.f32 %v1466, 0.0
      %v1479 = vmax.f32 %v1467, 0.0
      %v1480 = vmax.f32 %v1468, 0.0
      %v1481 = vmax.f32 %v1469, 0.0
      %v1482 = vmax.f32 %v1470, 0.0
      %v1483 = vmin.f32 %v1471, 6.0
      %v1484 = vmin.f32 %v1472, 6.0
      %v1485 = vmin.f32 %v1473, 6.0
      %v1486 = vmin.f32 %v1474, 6.0
      %v1487 = vmin.f32 %v1475, 6.0
      %v1488 = vmin.f32 %v1476, 6.0
      %v1489 = vmin.f32 %v1477, 6.0
      %v1490 = vmin.f32 %v1478, 6.0
      %v1491 = vmin.f32 %v1479, 6.0
      %v1492 = vmin.f32 %v1480, 6.0
      %v1493 = vmin.f32 %v1481, 6.0
      %v1494 = vmin.f32 %v1482, 6.0
      %vm1507 = vcmask 1040384
      %v1508 = vrot.slane %v1483, 7
      %v1509 = vrot.slane %v1484, 7
      %v1510 = vsel %vm1507, %v1508, %v1509
      %v1511 = vrot.slane %v1485, 7
      %v1512 = vsel %vm1507, %v1509, %v1511
      %v1513 = vrot.slane %v1486, 7
      %v1514 = vrot.slane %v1487, 7
      %v1515 = vsel %vm1507, %v1513, %v1514
      %v1516 = vrot.slane %v1488, 7
      %v1517 = vsel %vm1507, %v1514, %v1516
      %v1518 = vrot.slane %v1489, 7
      %v1519 = vrot.slane %v1490, 7
      %v1520 = vsel %vm1507, %v1518, %v1519
      %v1521 = vrot.slane %v1491, 7
      %v1522 = vsel %vm1507, %v1519, %v1521
      %v1523 = vrot.slane %v1492, 7
      %v1524 = vrot.slane %v1493, 7
      %v1525 = vsel %vm1507, %v1523, %v1524
      %v1526 = vrot.slane %v1494, 7
      %v1527 = vsel %vm1507, %v1524, %v1526
      %v1536 = vpack.c.bf16 %v1512, %v1510
      %v1537 = vpack.c.bf16 %v1517, %v1515
      %v1538 = vpack.c.bf16 %v1522, %v1520
      %v1539 = vpack.c.bf16 %v1527, %v1525
      %v1540 = vld [vmem:[%s7] sm:$0xf]
      %v1541 = vld [vmem:[%s7 + $0x4] sm:$0xf]
      %v1542 = vld [vmem:[%s7 + $0x8] sm:$0xf]
      %v1543 = vld [vmem:[%s7 + $0xc] sm:$0xf]
      %v1544 = vld [vmem:[%s7 + $0x10] sm:$0xf]
      %v1545 = vld [vmem:[%s7 + $0x14] sm:$0xf]
      %v1546 = vld [vmem:[%s8] sm:$0x1]
      %v1548 = vlaneseq
      %v1549 = vshrl.u32 %v1548, 7
      %v1550 = vsub.s32 0, %v1549
      %v1551 = vrot.slane %v1546, %v1550
      %v1559 = vunpack.c.l.b16 %v1540
      %v1560 = vunpack.c.l.b16 %v1541
      %v1561 = vunpack.c.l.b16 %v1542
      %v1562 = vunpack.c.l.b16 %v1543
      %v1563 = vunpack.c.l.b16 %v1544
      %v1564 = vunpack.c.l.b16 %v1545
      %v1565 = vpack.c.b16 %v1560, %v1559
      %v1566 = vpack.c.b16 %v1562, %v1561
      %v1567 = vpack.c.b16 %v1564, %v1563
      %vm1571 = vcmask 392192
      %v1573 = vsel %vm1571, %v1536, 0
      %v1576 = vsel %vm1571, %v1537, 0
      %v1579 = vsel %vm1571, %v1538, 0
      %v1582 = vsel %vm1571, %v1539, 0
      %1584 = vmatprep.subr.bf16.mxu0 0
      %1585 = vmatpush1.bf16.msra.mxu0 0
      %1586 = vmatprep.subr.bf16.mxu0 0
      %1587 = vmatpush1.bf16.msra.mxu0 0
      %1588 = vmatprep.subr.bf16.mxu0 0
      %1589 = vmatpush1.bf16.msra.mxu0 0
      %1590 = vmatprep.subr.bf16.mxu0 0
      %1591 = vmatpush1.bf16.msra.mxu0 0
      %1592 = vmatprep.subr.bf16.mxu0 0
      %1593 = vmatpush1.bf16.msra.mxu0 0
      %1594 = vmatprep.subr.bf16.mxu0 0
      %1595 = vmatpush1.bf16.msra.mxu0 %v1567
      %1596 = vmatprep.subr.bf16.mxu0 0
      %1597 = vmatpush1.bf16.msra.mxu0 %v1566
      %1598 = vmatprep.subr.bf16.mxu0 0
      %1599 = vmatpush1.bf16.msra.mxu0 %v1565
      %1600 = vmatprep.subr.bf16.mxu0 0
      %1601 = vmatpush2.bf16.msra.mxu0 0
      %1602 = vmatprep.subr.bf16.mxu0 0
      %1603 = vmatpush2.bf16.msra.mxu0 0
      %1604 = vmatprep.subr.bf16.mxu0 0
      %1605 = vmatpush2.bf16.msra.mxu0 0
      %1606 = vmatprep.subr.bf16.mxu0 0
      %1607 = vmatpush2.bf16.msra.mxu0 0
      %1608 = vmatprep.subr.bf16.mxu0 0
      %1609 = vmatpush2.bf16.msra.mxu0 0
      %1610 = vmatprep.subr.bf16.mxu0 0
      %1611 = vmatpush2.bf16.msra.mxu0 0
      %1612 = vmatprep.subr.bf16.mxu0 0
      %1613 = vmatpush2.bf16.msra.mxu0 0
      %1614 = vmatprep.subr.bf16.mxu0 0
      %1615 = vmatpush2.bf16.msra.mxu0 0
      %1616 = vmatprep.mubr.bf16.mxu0 0
      %1617 = vmatmul.mubr.bf16.gmra.mxu0 %v1573
      %v1618 = vpop.f32.mrf.mxu0
      %v1619 = vadd.f32 %v1551, %v1618
      %v1620 = vpop.f32.mrf.mxu0
      %v1621 = vpop.f32.mrf.mxu0
      %v1622 = vadd.f32 %v1551, %v1621
      %v1623 = vpop.f32.mrf.mxu0
      %1624 = vmatprep.mubr.bf16.mxu0 0
      %1625 = vmatmul.mubr.bf16.gmra.mxu0 %v1576
      %v1626 = vpop.f32.mrf.mxu0
      %v1627 = vadd.f32 %v1551, %v1626
      %v1628 = vpop.f32.mrf.mxu0
      %v1629 = vpop.f32.mrf.mxu0
      %v1630 = vadd.f32 %v1551, %v1629
      %v1631 = vpop.f32.mrf.mxu0
      %1632 = vmatprep.mubr.bf16.mxu0 0
      %1633 = vmatmul.mubr.bf16.gmra.mxu0 %v1579
      %v1634 = vpop.f32.mrf.mxu0
      %v1635 = vadd.f32 %v1551, %v1634
      %v1636 = vpop.f32.mrf.mxu0
      %v1637 = vpop.f32.mrf.mxu0
      %v1638 = vadd.f32 %v1551, %v1637
      %v1639 = vpop.f32.mrf.mxu0
      %1640 = vmatprep.mubr.bf16.mxu0 0
      %1641 = vmatmul.mubr.bf16.gmra.mxu0 %v1582
      %v1642 = vpop.f32.mrf.mxu0
      %v1643 = vadd.f32 %v1551, %v1642
      %v1644 = vpop.f32.mrf.mxu0
      %v1645 = vpop.f32.mrf.mxu0
      %v1646 = vadd.f32 %v1551, %v1645
      %v1647 = vpop.f32.mrf.mxu0
      %1648 = vdwg.mxu0
      %v1649 = vmax.f32 %v1619, 0.0
      %v1650 = vmax.f32 %v1622, 0.0
      %v1651 = vmax.f32 %v1627, 0.0
      %v1652 = vmax.f32 %v1630, 0.0
      %v1653 = vmax.f32 %v1635, 0.0
      %v1654 = vmax.f32 %v1638, 0.0
      %v1655 = vmax.f32 %v1643, 0.0
      %v1656 = vmax.f32 %v1646, 0.0
      %v1657 = vmin.f32 %v1649, 6.0
      %v1658 = vmin.f32 %v1650, 6.0
      %v1659 = vmin.f32 %v1651, 6.0
      %v1660 = vmin.f32 %v1652, 6.0
      %v1661 = vmin.f32 %v1653, 6.0
      %v1662 = vmin.f32 %v1654, 6.0
      %v1663 = vmin.f32 %v1655, 6.0
      %v1664 = vmin.f32 %v1656, 6.0
      %v1665 = vunpack.c.l.bf16 %v502
      %v1666 = vunpack.c.l.bf16 %v503
      %v1667 = vunpack.c.l.bf16 %v504
      %v1668 = vunpack.c.l.bf16 %v505
      %v1669 = vunpack.c.l.bf16 %v506
      %v1670 = vunpack.c.l.bf16 %v507
      %v1671 = vunpack.c.l.bf16 %v508
      %v1672 = vunpack.c.l.bf16 %v509
      %v1673 = vadd.f32 %v1657, %v1665
      %v1674 = vadd.f32 %v1658, %v1666
      %v1675 = vadd.f32 %v1659, %v1667
      %v1676 = vadd.f32 %v1660, %v1668
      %v1677 = vadd.f32 %v1661, %v1669
      %v1678 = vadd.f32 %v1662, %v1670
      %v1679 = vadd.f32 %v1663, %v1671
      %v1680 = vadd.f32 %v1664, %v1672
      %v1681 = vpack.c.bf16 %v1674, %v1673
      %v1682 = vpack.c.bf16 %v1676, %v1675
      %v1683 = vpack.c.bf16 %v1678, %v1677
      %v1684 = vpack.c.bf16 %v1680, %v1679
      %v1689 = vunpack.c.l.b16 %v1681
      %v1690 = vunpack.c.h.b16 %v1681
      %v1691 = vunpack.c.l.b16 %v1682
      %v1692 = vunpack.c.h.b16 %v1682
      %v1693 = vunpack.c.l.b16 %v1683
      %v1694 = vunpack.c.h.b16 %v1683
      %v1695 = vunpack.c.l.b16 %v1684
      %v1696 = vunpack.c.h.b16 %v1684
      %v1697 = vpack.c.b16 %v1689, %v1689
      %v1698 = vpack.c.b16 %v1690, %v1690
      %v1699 = vpack.c.b16 %v1691, %v1691
      %v1700 = vpack.c.b16 %v1692, %v1692
      %v1701 = vpack.c.b16 %v1693, %v1693
      %v1702 = vpack.c.b16 %v1694, %v1694
      %v1703 = vpack.c.b16 %v1695, %v1695
      %v1704 = vpack.c.b16 %v1696, %v1696
      %vm1713 = vcmask 60416
      %1714 = vst.msk [vmem:[%s499] sm:$0xf] %vm1713, %v1697
      %1715 = vst.msk [vmem:[%s499 + $0x4] sm:$0xf] %vm1713, %v1698
      %1716 = vst.msk [vmem:[%s499 + $0x8] sm:$0xf] %vm1713, %v1699
      %1717 = vst.msk [vmem:[%s499 + $0xc] sm:$0xf] %vm1713, %v1700
      %1718 = vst.msk [vmem:[%s499 + $0x10] sm:$0xf] %vm1713, %v1701
      %1719 = vst.msk [vmem:[%s499 + $0x14] sm:$0xf] %vm1713, %v1702
      %1720 = vst.msk [vmem:[%s499 + $0x18] sm:$0xf] %vm1713, %v1703
      %1721 = vst.msk [vmem:[%s499 + $0x1c] sm:$0xf] %vm1713, %v1704
      %s1722 = smul.u32 4, %s25
      %p1723 = scmp.lt.s32.totalorder %s24, 1
      %s1724 = scalar_select %p1723, %s24, 1
      %p1725 = scmp.lt.s32.totalorder %s1722, 15
      %s1726 = scalar_select %p1725, %s1722, 15
      %s1727 = smul.addr %s1726, 2
      %s1728 = smul.addr %s1724, 32
      %s1729 = sadd.s32 %s1727, %s1728
      %s1730 = smul.addr %s1729, 4
      %s1731 = scalar_lea.vmem %s9, %s1730
      // Predicated region
      $region73: #{tpu_custom_call.1} parent=55 // pred_check
        %p1732 = pneg %p278
      $region74: #{tpu_custom_call.1} parent=55 // pred_check_branch
        %1734 = sbr.rel (%p1732) target = $region76
      $region75: #{tpu_custom_call.1} parent=55 // pred_region
        %s1735 = smul.u32 4, %s25
      $region76: #{tpu_custom_call.1} parent=55 // pred_fallthru
        _
    $region56: #{tpu_custom_call.1} parent=5 // pred_fallthru
      _
    %p1736 = scmp.le.s32.totalorder 2, %s15
    // Predicated region
    $region77: #{tpu_custom_call.1} parent=5 // pred_check
      %p1737 = pneg %p1736
    $region78: #{tpu_custom_call.1} parent=5 // pred_check_branch
      %1739 = sbr.rel (%p1737) target = $region80
    $region79: #{tpu_custom_call.1} parent=5 // pred_region
      %s1740 = ssub.s32 %s15, 2
      // Predicated region
      $region81: #{tpu_custom_call.1} parent=79 // pred_check
        %p1741 = pneg %p284
      $region82: #{tpu_custom_call.1} parent=79 // pred_check_branch
        %1743 = sbr.rel (%p1741) target = $region84
      $region83: #{tpu_custom_call.1} parent=79 // pred_region
        %s1744 = smul.u32 4, %s27
        %p1745 = scmp.lt.s32.totalorder %s26, 1
        %s1746 = scalar_select %p1745, %s26, 1
        %p1747 = scmp.lt.s32.totalorder %s1744, 15
        %s1748 = scalar_select %p1747, %s1744, 15
        %s1749 = smul.addr %s1748, 2
        %s1750 = smul.addr %s1746, 32
        %s1751 = sadd.s32 %s1749, %s1750
        %s1752 = smul.addr %s1751, 4
        %s1753 = scalar_lea.vmem %s9, %s1752
      $region84: #{tpu_custom_call.1} parent=79 // pred_fallthru
        _
    $region80: #{tpu_custom_call.1} parent=5 // pred_fallthru
      _
  $region6: #{tpu_custom_call.1} parent=0 // loop_footer
    %s19 = sadd.s32 1, %s15
  $region7: #{tpu_custom_call.1} parent=0 // loop_footer_branch
    %14 = sbr.rel target = $region3
  $region8: #{tpu_custom_call.1} parent=0 // loop_exit
    _

</llo_original>
